<compile_context>
chip_gen: v7x
topology: tpu7x:2x2x1
jax: 0.10.0
libtpu: 0.0.40
codegen_flags: <defaults>
</compile_context>

<pallas_src>
import jax
import jax.numpy as jnp
from jax.experimental import pallas as pl
from jax.experimental.pallas import tpu as pltpu


def hmoe_kernel(
    feat_ref,            # [TB, D]            bf16
    wf_ref, bf_ref,      # [D, NF] bf16, [1, NF] f32   fused front weights/bias
    bgrp_ref,            # [NG, NG]           bf16     block-ones grouped-softmax sum
    rep_ref,             # [NG, 2T*E*S]       bf16     gate -> expert-lane replication
    w1_ref, b1_ref,      # [2T*E*S, 2T*H] bf16, [1, 2T*H] f32   block-diag tower-1
    w2_ref, b2_ref,      # [2T*H, 2T]     bf16, [1, 2T]   f32   block-diag tower heads
    sel_ref,             # [2T, 128]          bf16     gate-mixed per-model sum selector
    out_ref,             # [TB, 128]          f32      cols 0/1 = pred_ctr / pred_cvr
):
    bf16 = jnp.bfloat16
    T2 = sel_ref.shape[0]        # 2 * scenario_nums
    ES2T = rep_ref.shape[1]      # 2 * T * E * S

    feat = feat_ref[...]                                               # [TB, D] bf16

    # ---- one fused feat contraction: experts (tiled over tasks) | top gate x2 | MMoE gates
    front = jnp.dot(feat, wf_ref[...],
                    preferred_element_type=jnp.float32) + bf_ref[...]  # [TB, NF] f32

    # expert outputs for every (model, task) block, ReLU, bf16 for downstream matmuls
    eo = jnp.maximum(front[:, :ES2T], 0.0).astype(bf16)                # [TB, 2T*E*S]

    # ---- grouped softmax over [top gate (2 groups of T) | MMoE gates (2T groups of E)]
    gl = front[:, ES2T:]                                               # [TB, NG]
    rowm = jnp.max(gl, axis=-1, keepdims=True)
    # row-global max + clamp keeps every group sum > 0 (per-group ratios preserved
    # for logit spreads up to 60, far beyond anything a single Linear produces here)
    e_exp = jnp.exp(jnp.maximum(gl - rowm, -60.0))
    gs = jnp.dot(e_exp.astype(bf16), bgrp_ref[...],
                 preferred_element_type=jnp.float32)                   # per-group sums, bcast
    gw = (e_exp * pl.reciprocal(gs, approx=True)).astype(bf16)         # [TB, NG]

    # ---- MMoE gate replication across each expert's S lanes and all (model, task) blocks
    gwrep = jnp.dot(gw, rep_ref[...],
                    preferred_element_type=jnp.float32).astype(bf16)   # [TB, 2T*E*S]
    weighted = gwrep * eo                                              # [TB, 2T*E*S] bf16

    # ---- tower layer 1: block-diag across 2T blocks; expert sum folded via E-tiled weights
    h1 = jnp.maximum(
        jnp.dot(weighted, w1_ref[...], preferred_element_type=jnp.float32) + b1_ref[...],
        0.0).astype(bf16)                                              # [TB, 2T*H]

    # ---- tower heads: one scalar per (model, task)
    heads = jnp.dot(h1, w2_ref[...],
                    preferred_element_type=jnp.float32) + b2_ref[...]  # [TB, 2T]

    # ---- scenario-gate mixture + per-model sum (bmm(gate, stack(tasks)) of the reference)
    # gw[:, :2T] is the softmaxed HMoE top gate, duplicated once per model.
    mixed = (gw[:, :T2].astype(jnp.float32) * heads).astype(bf16)      # [TB, 2T]
    logits = jnp.dot(mixed, sel_ref[...],
                     preferred_element_type=jnp.float32)               # [TB, 128] lane-dense
    out_ref[...] = jax.nn.sigmoid(logits)


def _round_up(x, m):
    return (x + m - 1) // m * m


def hmoe_forward(x, params, feature_names, *, block_b=2048):
    """x: dict name -> int32 [B] index vector.  Returns (pred_ctr[B], pred_cvr[B], None, None)."""
    # ---- embedding lookup + concat (plain-JAX glue), built directly in bf16 ----
    embs = [params["emb"][name][x[name]] for name in feature_names]
    feat = jnp.concatenate(embs, axis=1).astype(jnp.bfloat16)          # [B, D] bf16
    B, D = feat.shape

    # Batch tile: as large as block_b, but capped at ceil(B/2) (rounded to 128) so the
    # parallel grid has >= 2 steps whenever possible (both v7x TensorCores get work).
    tb = min(block_b, max(128, _round_up((B + 1) // 2, 128)))
    b_pad = _round_up(B, tb)
    if b_pad != B:
        feat = jnp.pad(feat, ((0, b_pad - B), (0, 0)))

    p = params
    weights = (p["wf"], p["bf"], p["bgrp"], p["rep"],
               p["w1bd"], p["b1f"], p["w2bd"], p["b2f"], p["sel"])
    n_out = p["sel"].shape[1]                                          # 128 (lane-dense)

    def const_spec(a):
        nd = a.ndim
        return pl.BlockSpec(a.shape, lambda i, _nd=nd: (0,) * _nd)

    grid = (b_pad // tb,)
    out = pl.pallas_call(
        hmoe_kernel,
        out_shape=jax.ShapeDtypeStruct((b_pad, n_out), jnp.float32),
        grid=grid,
        in_specs=[pl.BlockSpec((tb, D), lambda i: (i, 0))]
                 + [const_spec(w) for w in weights],
        out_specs=pl.BlockSpec((tb, n_out), lambda i: (i, 0)),
        compiler_params=pltpu.CompilerParams(
            dimension_semantics=("parallel",),
            vmem_limit_bytes=48 * 1024 * 1024,
        ),
    )(feat, *weights)

    # torch.squeeze on [B,1,1] -> [B]; padded rows / padded lanes are discarded here.
    return out[:B, 0], out[:B, 1], None, None


def init_params(key, feature_vocabulary, embedding_size,
                scenario_nums, expert_nums, expert_size, gate_size, tower_size):
    feature_names = sorted(feature_vocabulary.keys())
    D = len(feature_names) * embedding_size
    T, E, S, H, G = scenario_nums, expert_nums, expert_size, tower_size, gate_size
    ES = E * S
    bf16 = jnp.bfloat16

    ctr = [0]
    def nk():
        ctr[0] += 1
        return jax.random.fold_in(key, ctr[0])

    def dense(shape, scale=0.1):
        return (scale * jax.random.normal(nk(), shape)).astype(jnp.float32)

    params = {}
    # embeddings: normal(0, 0.01) as in __init_weight
    params["emb"] = {
        name: (0.01 * jax.random.normal(nk(), (size, embedding_size))).astype(jnp.float32)
        for name, size in feature_vocabulary.items()
    }

    # --- original (per-module) layouts, matching torch.nn.Linear(in, out): y = x @ W + b ---
    exp_w = dense((2, E, D, S)); exp_b = dense((2, E, S))      # MMoE experts
    mg_w = dense((2, T, D, E));  mg_b = dense((2, T, E))       # MMoE per-task gates
    tw1 = dense((2, T, S, H));   tb1 = dense((2, T, H))        # tower layer 1
    tw2 = dense((2, T, H, 1));   tb2 = dense((2, T, 1))        # tower head
    gw1 = dense((D, G)); gb1 = dense((G,))                     # HMoE top gate (3 Linears)
    gw2 = dense((G, G)); gb2 = dense((G,))
    gw3 = dense((G, T)); gb3 = dense((T,))

    # --- host-side fusion / reordering (exact in real arithmetic; zero runtime cost) ---
    # 1) collapse the 3 stacked Linear layers of the top gate (no nonlinearity between them)
    wtop = gw1 @ gw2 @ gw3                                     # [D, T]
    btop = (gb1 @ gw2 + gb2) @ gw3 + gb3                       # [T]

    # 2) fused front weight: [experts tiled over (model,task) | top gate x2 | MMoE gates]
    #    (model, task) block index j = m*T + t throughout.
    expA = jnp.transpose(exp_w, (0, 2, 1, 3)).reshape(2, D, ES)          # [2, D, E*S]
    expbA = exp_b.reshape(2, ES)
    exp_tiled = jnp.concatenate([jnp.tile(expA[m], (1, T)) for m in range(2)], axis=1)
    expb_tiled = jnp.concatenate([jnp.tile(expbA[m], (T,)) for m in range(2)], axis=0)
    mg_all = jnp.transpose(mg_w, (2, 0, 1, 3)).reshape(D, 2 * T * E)     # (m,t,e) lane order
    mgb_all = mg_b.reshape(2 * T * E)
    wf = jnp.concatenate([exp_tiled, jnp.concatenate([wtop, wtop], axis=1), mg_all], axis=1)
    bfused = jnp.concatenate([expb_tiled, jnp.concatenate([btop, btop]), mgb_all])[None, :]

    # 3) grouped-softmax block-ones matrix over NG = 2T + 2T*E gate lanes
    NG = 2 * T + 2 * T * E
    group_id = jnp.concatenate([
        jnp.repeat(jnp.arange(2), T),            # two (identical) top-gate groups of size T
        2 + jnp.repeat(jnp.arange(2 * T), E),    # 2T MMoE-gate groups of size E
    ])
    bgrp = (group_id[:, None] == group_id[None, :]).astype(bf16)         # [NG, NG]

    # 4) 0/1 replication matrix: MMoE gate lane (m,t,e) -> S ones in block (m,t), sub-block e
    cols = jnp.arange(2 * T * ES)
    row_for_col = 2 * T + (cols // ES) * E + ((cols % ES) // S)
    rep = (jnp.arange(NG)[:, None] == row_for_col[None, :]).astype(bf16)  # [NG, 2T*E*S]

    # 5) block-diagonal tower weights across the 2T (model, task) blocks
    w1bd = jnp.zeros((2 * T * ES, 2 * T * H), jnp.float32)
    b1f = jnp.zeros((2 * T * H,), jnp.float32)
    w2bd = jnp.zeros((2 * T * H, 2 * T), jnp.float32)
    b2f = jnp.zeros((2 * T,), jnp.float32)
    for m in range(2):
        for t in range(T):
            j = m * T + t
            # tower-1 weight tiled over E so the expert sum happens inside the matmul
            w1bd = w1bd.at[j * ES:(j + 1) * ES, j * H:(j + 1) * H].set(jnp.tile(tw1[m, t], (E, 1)))
            b1f = b1f.at[j * H:(j + 1) * H].set(tb1[m, t])
            w2bd = w2bd.at[j * H:(j + 1) * H, j].set(tw2[m, t, :, 0])
            b2f = b2f.at[j].set(tb2[m, t, 0])

    # 6) gate-mixed per-model sum selector, padded to 128 lanes for a lane-dense output store
    NOUT = 128
    sel = jnp.zeros((2 * T, NOUT), jnp.float32)
    sel = sel.at[jnp.arange(2 * T), jnp.arange(2 * T) // T].set(1.0)

    params.update({
        "wf": wf.astype(bf16), "bf": bfused,
        "bgrp": bgrp, "rep": rep,
        "w1bd": w1bd.astype(bf16), "b1f": b1f[None, :],
        "w2bd": w2bd.astype(bf16), "b2f": b2f[None, :],
        "sel": sel.astype(bf16),
    })
    return params, feature_names, D


if __name__ == "__main__":
    key = jax.random.PRNGKey(0)

    # small, self-consistent config
    feature_vocabulary = {"101": 11, "201": 7, "205": 5, "301": 4}
    embedding_size = 8
    batch = 8
    scenario_nums = 3
    expert_nums = 4
    expert_size = 16
    gate_size = 16
    tower_size = 8

    params, feature_names, input_size = init_params(
        key, feature_vocabulary, embedding_size,
        scenario_nums, expert_nums, expert_size, gate_size, tower_size,
    )

    # deterministic integer feature inputs (one id per feature per example)
    x = {}
    for i, name in enumerate(feature_names):
        k = jax.random.fold_in(key, 1000 + i)
        x[name] = jax.random.randint(k, (batch,), 0, feature_vocabulary[name], dtype=jnp.int32)

    pred_ctr, pred_cvr, _, _ = hmoe_forward(x, params, feature_names)
    jax.block_until_ready((pred_ctr, pred_cvr))

    assert pred_ctr.shape == (batch,) and pred_cvr.shape == (batch,)
    assert bool(jnp.all(jnp.isfinite(pred_ctr))) and bool(jnp.all(jnp.isfinite(pred_cvr)))
    assert bool(jnp.all((pred_ctr > 0) & (pred_ctr < 1)))
    assert bool(jnp.all((pred_cvr > 0) & (pred_cvr < 1)))
    print("KERNEL_OK")
</pallas_src>

<mosaic_0001>
module attributes {stable_mosaic.version = 11 : i64} {
  func.func @hmoe_kernel(%arg0: i32, %arg1: memref<128x32xbf16, #tpu.memory_space<vmem>>, %arg2: memref<32x414xbf16, #tpu.memory_space<vmem>>, %arg3: memref<1x414xf32, #tpu.memory_space<vmem>>, %arg4: memref<30x30xbf16, #tpu.memory_space<vmem>>, %arg5: memref<30x384xbf16, #tpu.memory_space<vmem>>, %arg6: memref<384x48xbf16, #tpu.memory_space<vmem>>, %arg7: memref<1x48xf32, #tpu.memory_space<vmem>>, %arg8: memref<48x6xbf16, #tpu.memory_space<vmem>>, %arg9: memref<1x6xf32, #tpu.memory_space<vmem>>, %arg10: memref<6x128xbf16, #tpu.memory_space<vmem>>, %arg11: memref<128x128xf32, #tpu.memory_space<vmem>>) attributes {dimension_semantics = [#tpu.dimension_semantics<parallel>], iteration_bounds = array<i64: 1>, scalar_prefetch = 0 : i64, scratch_operands = 0 : i64, tpu.core_type = #tpu.core_type<tc>, window_params = [{transform_indices = @transform_0, window_bounds = array<i64: 128, 32>}, {pipeline_mode = #tpu.pipeline_mode<synchronous>, transform_indices = @transform_1, window_bounds = array<i64: 32, 414>}, {pipeline_mode = #tpu.pipeline_mode<synchronous>, transform_indices = @transform_2, window_bounds = array<i64: 1, 414>}, {pipeline_mode = #tpu.pipeline_mode<synchronous>, transform_indices = @transform_3, window_bounds = array<i64: 30, 30>}, {pipeline_mode = #tpu.pipeline_mode<synchronous>, transform_indices = @transform_4, window_bounds = array<i64: 30, 384>}, {pipeline_mode = #tpu.pipeline_mode<synchronous>, transform_indices = @transform_5, window_bounds = array<i64: 384, 48>}, {pipeline_mode = #tpu.pipeline_mode<synchronous>, transform_indices = @transform_6, window_bounds = array<i64: 1, 48>}, {pipeline_mode = #tpu.pipeline_mode<synchronous>, transform_indices = @transform_7, window_bounds = array<i64: 48, 6>}, {pipeline_mode = #tpu.pipeline_mode<synchronous>, transform_indices = @transform_8, window_bounds = array<i64: 1, 6>}, {pipeline_mode = #tpu.pipeline_mode<synchronous>, transform_indices = @transform_9, window_bounds = array<i64: 6, 128>}, {transform_indices = @transform_10, window_bounds = array<i64: 128, 128>}]} {
    %c0 = arith.constant 0 : index
    %c0_0 = arith.constant 0 : index
    %0 = vector.load %arg1[%c0, %c0_0] : memref<128x32xbf16, #tpu.memory_space<vmem>>, vector<128x32xbf16>
    %c0_1 = arith.constant 0 : index
    %c0_2 = arith.constant 0 : index
    %1 = vector.load %arg2[%c0_1, %c0_2] : memref<32x414xbf16, #tpu.memory_space<vmem>>, vector<32x414xbf16>
    %cst = arith.constant dense<0.000000e+00> : vector<128x414xf32>
    %2 = tpu.matmul %0, %1, %cst {dimension_numbers = #tpu.dot_dimension_numbers<[1], [0], [0], [1], [0, 0, 1, 1], [], []>} : vector<128x32xbf16>, vector<32x414xbf16>, vector<128x414xf32> -> vector<128x414xf32>
    %c0_3 = arith.constant 0 : index
    %c0_4 = arith.constant 0 : index
    %3 = vector.load %arg3[%c0_3, %c0_4] : memref<1x414xf32, #tpu.memory_space<vmem>>, vector<1x414xf32>
    %4 = vector.broadcast %3 : vector<1x414xf32> to vector<128x414xf32>
    %5 = arith.addf %2, %4 : vector<128x414xf32>
    %6 = vector.extract_strided_slice %5 {offsets = [0, 0], sizes = [128, 384], strides = [1, 1]} : vector<128x414xf32> to vector<128x384xf32>
    %cst_5 = arith.constant 0.000000e+00 : f32
    %7 = vector.broadcast %cst_5 : f32 to vector<128x384xf32>
    %8 = arith.maximumf %6, %7 : vector<128x384xf32>
    %9 = arith.truncf %8 : vector<128x384xf32> to vector<128x384xbf16>
    %10 = vector.extract_strided_slice %5 {offsets = [0, 384], sizes = [128, 30], strides = [1, 1]} : vector<128x414xf32> to vector<128x30xf32>
    %cst_6 = arith.constant dense<0xFF800000> : vector<128xf32>
    %11 = vector.multi_reduction <maximumf>, %10, %cst_6 [1] : vector<128x30xf32> to vector<128xf32>
    %12 = vector.shape_cast %11 : vector<128xf32> to vector<128x1xf32>
    %13 = vector.broadcast %12 : vector<128x1xf32> to vector<128x30xf32>
    %14 = arith.subf %10, %13 : vector<128x30xf32>
    %cst_7 = arith.constant -6.000000e+01 : f32
    %15 = vector.broadcast %cst_7 : f32 to vector<128x30xf32>
    %16 = arith.maximumf %14, %15 : vector<128x30xf32>
    %17 = math.exp %16 : vector<128x30xf32>
    %18 = arith.truncf %17 : vector<128x30xf32> to vector<128x30xbf16>
    %c0_8 = arith.constant 0 : index
    %c0_9 = arith.constant 0 : index
    %19 = vector.load %arg4[%c0_8, %c0_9] : memref<30x30xbf16, #tpu.memory_space<vmem>>, vector<30x30xbf16>
    %cst_10 = arith.constant dense<0.000000e+00> : vector<128x30xf32>
    %20 = tpu.matmul %18, %19, %cst_10 {dimension_numbers = #tpu.dot_dimension_numbers<[1], [0], [0], [1], [0, 0, 1, 1], [], []>} : vector<128x30xbf16>, vector<30x30xbf16>, vector<128x30xf32> -> vector<128x30xf32>
    %21 = tpu.reciprocal %20 {approx = true} : vector<128x30xf32> -> vector<128x30xf32>
    %22 = arith.mulf %17, %21 : vector<128x30xf32>
    %23 = arith.truncf %22 : vector<128x30xf32> to vector<128x30xbf16>
    %c0_11 = arith.constant 0 : index
    %c0_12 = arith.constant 0 : index
    %24 = vector.load %arg5[%c0_11, %c0_12] : memref<30x384xbf16, #tpu.memory_space<vmem>>, vector<30x384xbf16>
    %cst_13 = arith.constant dense<0.000000e+00> : vector<128x384xf32>
    %25 = tpu.matmul %23, %24, %cst_13 {dimension_numbers = #tpu.dot_dimension_numbers<[1], [0], [0], [1], [0, 0, 1, 1], [], []>} : vector<128x30xbf16>, vector<30x384xbf16>, vector<128x384xf32> -> vector<128x384xf32>
    %26 = arith.truncf %25 : vector<128x384xf32> to vector<128x384xbf16>
    %27 = arith.mulf %26, %9 : vector<128x384xbf16>
    %c0_14 = arith.constant 0 : index
    %c0_15 = arith.constant 0 : index
    %28 = vector.load %arg6[%c0_14, %c0_15] : memref<384x48xbf16, #tpu.memory_space<vmem>>, vector<384x48xbf16>
    %cst_16 = arith.constant dense<0.000000e+00> : vector<128x48xf32>
    %29 = tpu.matmul %27, %28, %cst_16 {dimension_numbers = #tpu.dot_dimension_numbers<[1], [0], [0], [1], [0, 0, 1, 1], [], []>} : vector<128x384xbf16>, vector<384x48xbf16>, vector<128x48xf32> -> vector<128x48xf32>
    %c0_17 = arith.constant 0 : index
    %c0_18 = arith.constant 0 : index
    %30 = vector.load %arg7[%c0_17, %c0_18] : memref<1x48xf32, #tpu.memory_space<vmem>>, vector<1x48xf32>
    %31 = vector.broadcast %30 : vector<1x48xf32> to vector<128x48xf32>
    %32 = arith.addf %29, %31 : vector<128x48xf32>
    %cst_19 = arith.constant 0.000000e+00 : f32
    %33 = vector.broadcast %cst_19 : f32 to vector<128x48xf32>
    %34 = arith.maximumf %32, %33 : vector<128x48xf32>
    %35 = arith.truncf %34 : vector<128x48xf32> to vector<128x48xbf16>
    %c0_20 = arith.constant 0 : index
    %c0_21 = arith.constant 0 : index
    %36 = vector.load %arg8[%c0_20, %c0_21] : memref<48x6xbf16, #tpu.memory_space<vmem>>, vector<48x6xbf16>
    %cst_22 = arith.constant dense<0.000000e+00> : vector<128x6xf32>
    %37 = tpu.matmul %35, %36, %cst_22 {dimension_numbers = #tpu.dot_dimension_numbers<[1], [0], [0], [1], [0, 0, 1, 1], [], []>} : vector<128x48xbf16>, vector<48x6xbf16>, vector<128x6xf32> -> vector<128x6xf32>
    %c0_23 = arith.constant 0 : index
    %c0_24 = arith.constant 0 : index
    %38 = vector.load %arg9[%c0_23, %c0_24] : memref<1x6xf32, #tpu.memory_space<vmem>>, vector<1x6xf32>
    %39 = vector.broadcast %38 : vector<1x6xf32> to vector<128x6xf32>
    %40 = arith.addf %37, %39 : vector<128x6xf32>
    %41 = vector.extract_strided_slice %23 {offsets = [0, 0], sizes = [128, 6], strides = [1, 1]} : vector<128x30xbf16> to vector<128x6xbf16>
    %42 = arith.extf %41 : vector<128x6xbf16> to vector<128x6xf32>
    %43 = arith.mulf %42, %40 : vector<128x6xf32>
    %44 = arith.truncf %43 : vector<128x6xf32> to vector<128x6xbf16>
    %c0_25 = arith.constant 0 : index
    %c0_26 = arith.constant 0 : index
    %45 = vector.load %arg10[%c0_25, %c0_26] : memref<6x128xbf16, #tpu.memory_space<vmem>>, vector<6x128xbf16>
    %cst_27 = arith.constant dense<0.000000e+00> : vector<128x128xf32>
    %46 = tpu.matmul %44, %45, %cst_27 {dimension_numbers = #tpu.dot_dimension_numbers<[1], [0], [0], [1], [0, 0, 1, 1], [], []>} : vector<128x6xbf16>, vector<6x128xbf16>, vector<128x128xf32> -> vector<128x128xf32>
    %47 = arith.negf %46 : vector<128x128xf32>
    %48 = math.exp %47 : vector<128x128xf32>
    %cst_28 = arith.constant 1.000000e+00 : f32
    %49 = vector.broadcast %cst_28 : f32 to vector<128x128xf32>
    %50 = arith.addf %49, %48 : vector<128x128xf32>
    %51 = arith.divf %49, %50 : vector<128x128xf32>
    %c0_29 = arith.constant 0 : index
    %c0_30 = arith.constant 0 : index
    %52 = vector.load %arg11[%c0_29, %c0_30] : memref<128x128xf32, #tpu.memory_space<vmem>>, vector<128x128xf32>
    tpu.vector_store %arg11[%c0_29, %c0_30], %51 {strides = array<i32>} : memref<128x128xf32, #tpu.memory_space<vmem>>, vector<128x128xf32>,
    return
  }
  func.func @transform_0(%arg0: i32) -> (i32, i32) {
    %c0_i32 = arith.constant 0 : i32
    %c0_i32_0 = arith.constant 0 : i32
    return %arg0, %c0_i32 : i32, i32
  }
  func.func @transform_1(%arg0: i32) -> (i32, i32) {
    %c0_i32 = arith.constant 0 : i32
    %c0_i32_0 = arith.constant 0 : i32
    %c0_i32_1 = arith.constant 0 : i32
    return %c0_i32, %c0_i32_0 : i32, i32
  }
  func.func @transform_2(%arg0: i32) -> (i32, i32) {
    %c0_i32 = arith.constant 0 : i32
    %c0_i32_0 = arith.constant 0 : i32
    %c0_i32_1 = arith.constant 0 : i32
    return %c0_i32, %c0_i32_0 : i32, i32
  }
  func.func @transform_3(%arg0: i32) -> (i32, i32) {
    %c0_i32 = arith.constant 0 : i32
    %c0_i32_0 = arith.constant 0 : i32
    %c0_i32_1 = arith.constant 0 : i32
    return %c0_i32, %c0_i32_0 : i32, i32
  }
  func.func @transform_4(%arg0: i32) -> (i32, i32) {
    %c0_i32 = arith.constant 0 : i32
    %c0_i32_0 = arith.constant 0 : i32
    %c0_i32_1 = arith.constant 0 : i32
    return %c0_i32, %c0_i32_0 : i32, i32
  }
  func.func @transform_5(%arg0: i32) -> (i32, i32) {
    %c0_i32 = arith.constant 0 : i32
    %c0_i32_0 = arith.constant 0 : i32
    %c0_i32_1 = arith.constant 0 : i32
    return %c0_i32, %c0_i32_0 : i32, i32
  }
  func.func @transform_6(%arg0: i32) -> (i32, i32) {
    %c0_i32 = arith.constant 0 : i32
    %c0_i32_0 = arith.constant 0 : i32
    %c0_i32_1 = arith.constant 0 : i32
    return %c0_i32, %c0_i32_0 : i32, i32
  }
  func.func @transform_7(%arg0: i32) -> (i32, i32) {
    %c0_i32 = arith.constant 0 : i32
    %c0_i32_0 = arith.constant 0 : i32
    %c0_i32_1 = arith.constant 0 : i32
    return %c0_i32, %c0_i32_0 : i32, i32
  }
  func.func @transform_8(%arg0: i32) -> (i32, i32) {
    %c0_i32 = arith.constant 0 : i32
    %c0_i32_0 = arith.constant 0 : i32
    %c0_i32_1 = arith.constant 0 : i32
    return %c0_i32, %c0_i32_0 : i32, i32
  }
  func.func @transform_9(%arg0: i32) -> (i32, i32) {
    %c0_i32 = arith.constant 0 : i32
    %c0_i32_0 = arith.constant 0 : i32
    %c0_i32_1 = arith.constant 0 : i32
    return %c0_i32, %c0_i32_0 : i32, i32
  }
  func.func @transform_10(%arg0: i32) -> (i32, i32) {
    %c0_i32 = arith.constant 0 : i32
    %c0_i32_0 = arith.constant 0 : i32
    return %arg0, %c0_i32 : i32, i32
  }
}

</mosaic_0001>

<llo_original>
// kernel: tpu_custom_call.1
$region0: #{tpu_custom_call.1}
  #allocation0 [shape = 'u32[]', space=smem, size = 0x4, offset = 0x4, fixed_abs, tag = 'smem constant byte address 0x4 - core index']
  #allocation1 [shape = 'u32[144,128]{1,0:T(1,128)}', space=vmem, size = 0x12000, scoped, tag = 'internal scratch']
  %s0 = inlined_call_operand.vmem [shape: bf16[128,32], index: 0, kind: input, shape index: {}]
  %s1 = inlined_call_operand.vmem [shape: bf16[32,414], index: 1, kind: input, shape index: {}]
  %s2 = inlined_call_operand.vmem [shape: f32[1,414], index: 2, kind: input, shape index: {}]
  %s3 = inlined_call_operand.vmem [shape: bf16[30,30], index: 3, kind: input, shape index: {}]
  %s4 = inlined_call_operand.vmem [shape: bf16[30,384], index: 4, kind: input, shape index: {}]
  %s5 = inlined_call_operand.vmem [shape: bf16[384,48], index: 5, kind: input, shape index: {}]
  %s6 = inlined_call_operand.vmem [shape: f32[1,48], index: 6, kind: input, shape index: {}]
  %s7 = inlined_call_operand.vmem [shape: bf16[48,6], index: 7, kind: input, shape index: {}]
  %s8 = inlined_call_operand.vmem [shape: f32[1,6], index: 8, kind: input, shape index: {}]
  %s9 = inlined_call_operand.vmem [shape: bf16[6,128], index: 9, kind: input, shape index: {}]
  %s10 = inlined_call_operand.hbm [shape: f32[128,128], index: 10, kind: output, shape index: {}]
  %s11 = sld [smem:[#allocation0]]
  $region50: #{tpu_custom_call.1} parent=0
    _
  %s13 = ssub.s32 1, %s11
  %s14 = scalar_select 0, %s13, %s11
  $region1: #{tpu_custom_call.1} parent=0
    #allocation2 [shape = 'u8[65536]{0}', space=vmem, size = 0x10000, scoped, tag = 'output window, operand 0, single buffered']
    #allocation3 [shape = 's32[1]{0}', space=sflag, size = 0x4, scoped, tag = 'scoped memory for tpu_custom_call.1']
    %15 = vsyncpa [#allocation3], 0
    // Predicated region
    $region2: #{tpu_custom_call.1} parent=1 // pred_check
      _
    $region3: #{tpu_custom_call.1} parent=1 // pred_check_branch
      %17 = sbr.rel (0) target = $region5
    $region4: #{tpu_custom_call.1} parent=1 // pred_region
      _
    $region5: #{tpu_custom_call.1} parent=1 // pred_fallthru
      _
    // Predicated region
    $region6: #{tpu_custom_call.1} parent=1 // pred_check
      _
    $region7: #{tpu_custom_call.1} parent=1 // pred_check_branch
      %19 = sbr.rel (0) target = $region9
    $region8: #{tpu_custom_call.1} parent=1 // pred_region
      _
    $region9: #{tpu_custom_call.1} parent=1 // pred_fallthru
      _
    // Predicated region
    $region10: #{tpu_custom_call.1} parent=1 // pred_check
      _
    $region11: #{tpu_custom_call.1} parent=1 // pred_check_branch
      %21 = sbr.rel (0) target = $region13
    $region12: #{tpu_custom_call.1} parent=1 // pred_region
      _
    $region13: #{tpu_custom_call.1} parent=1 // pred_fallthru
      _
    // Predicated region
    $region14: #{tpu_custom_call.1} parent=1 // pred_check
      _
    $region15: #{tpu_custom_call.1} parent=1 // pred_check_branch
      %23 = sbr.rel (0) target = $region17
    $region16: #{tpu_custom_call.1} parent=1 // pred_region
      _
    $region17: #{tpu_custom_call.1} parent=1 // pred_fallthru
      _
    // Predicated region
    $region18: #{tpu_custom_call.1} parent=1 // pred_check
      _
    $region19: #{tpu_custom_call.1} parent=1 // pred_check_branch
      %25 = sbr.rel (0) target = $region21
    $region20: #{tpu_custom_call.1} parent=1 // pred_region
      _
    $region21: #{tpu_custom_call.1} parent=1 // pred_fallthru
      _
    // Predicated region
    $region22: #{tpu_custom_call.1} parent=1 // pred_check
      _
    $region23: #{tpu_custom_call.1} parent=1 // pred_check_branch
      %27 = sbr.rel (0) target = $region25
    $region24: #{tpu_custom_call.1} parent=1 // pred_region
      _
    $region25: #{tpu_custom_call.1} parent=1 // pred_fallthru
      _
    // Predicated region
    $region26: #{tpu_custom_call.1} parent=1 // pred_check
      _
    $region27: #{tpu_custom_call.1} parent=1 // pred_check_branch
      %29 = sbr.rel (0) target = $region29
    $region28: #{tpu_custom_call.1} parent=1 // pred_region
      _
    $region29: #{tpu_custom_call.1} parent=1 // pred_fallthru
      _
    // Predicated region
    $region30: #{tpu_custom_call.1} parent=1 // pred_check
      _
    $region31: #{tpu_custom_call.1} parent=1 // pred_check_branch
      %31 = sbr.rel (0) target = $region33
    $region32: #{tpu_custom_call.1} parent=1 // pred_region
      _
    $region33: #{tpu_custom_call.1} parent=1 // pred_fallthru
      _
    // Predicated region
    $region34: #{tpu_custom_call.1} parent=1 // pred_check
      _
    $region35: #{tpu_custom_call.1} parent=1 // pred_check_branch
      %33 = sbr.rel (0) target = $region37
    $region36: #{tpu_custom_call.1} parent=1 // pred_region
      _
    $region37: #{tpu_custom_call.1} parent=1 // pred_fallthru
      _
    // Predicated region
    $region38: #{tpu_custom_call.1} parent=1 // pred_check
      _
    $region39: #{tpu_custom_call.1} parent=1 // pred_check_branch
      %35 = sbr.rel (0) target = $region41
    $region40: #{tpu_custom_call.1} parent=1 // pred_region
      _
    $region41: #{tpu_custom_call.1} parent=1 // pred_fallthru
      _
    %v37 = vld [vmem:[%s0] sm:$0xf]
    %v38 = vld [vmem:[%s0 + $0x4] sm:$0xf]
    %v39 = vld [vmem:[%s0 + $0x8] sm:$0xf]
    %v40 = vld [vmem:[%s0 + $0xc] sm:$0xf]
    %v41 = vld [vmem:[%s0 + $0x10] sm:$0xf]
    %v42 = vld [vmem:[%s0 + $0x14] sm:$0xf]
    %v43 = vld [vmem:[%s0 + $0x18] sm:$0xf]
    %v44 = vld [vmem:[%s0 + $0x1c] sm:$0xf]
    %v45 = vld [vmem:[%s0 + $0x20] sm:$0xf]
    %v46 = vld [vmem:[%s0 + $0x24] sm:$0xf]
    %v47 = vld [vmem:[%s0 + $0x28] sm:$0xf]
    %v48 = vld [vmem:[%s0 + $0x2c] sm:$0xf]
    %v49 = vld [vmem:[%s0 + $0x30] sm:$0xf]
    %v50 = vld [vmem:[%s0 + $0x34] sm:$0xf]
    %v51 = vld [vmem:[%s0 + $0x38] sm:$0xf]
    %v52 = vld [vmem:[%s0 + $0x3c] sm:$0xf]
    %v53 = vld [vmem:[%s1] sm:$0xff]
    %v54 = vld [vmem:[%s1 + $0x8] sm:$0xff]
    %v55 = vld [vmem:[%s1 + $0x10] sm:$0xff]
    %v56 = vld [vmem:[%s1 + $0x18] sm:$0xff]
    %v57 = vld [vmem:[%s1 + $0x20] sm:$0xff]
    %v58 = vld [vmem:[%s1 + $0x28] sm:$0xff]
    %v59 = vld [vmem:[%s1 + $0x30] sm:$0xff]
    %v60 = vld [vmem:[%s1 + $0x38] sm:$0xff]
    %v61 = vld [vmem:[%s2] sm:$0xf]
    %v63 = vlaneseq
    %v64 = vshrl.u32 %v63, 7
    %v65 = vsub.s32 0, %v64
    %v66 = vrot.slane %v61, %v65
    %v67 = vlaneseq
    %v68 = vshrl.u32 %v67, 7
    %v69 = vsub.s32 1, %v68
    %v70 = vrot.slane %v61, %v69
    %v71 = vlaneseq
    %v72 = vshrl.u32 %v71, 7
    %v73 = vsub.s32 2, %v72
    %v74 = vrot.slane %v61, %v73
    %v75 = vlaneseq
    %v76 = vshrl.u32 %v75, 7
    %v77 = vsub.s32 3, %v76
    %v78 = vrot.slane %v61, %v77
    %v99 = vunpack.c.l.b16 %v37
    %v100 = vunpack.c.l.b16 %v38
    %v101 = vunpack.c.l.b16 %v39
    %v102 = vunpack.c.l.b16 %v40
    %v103 = vunpack.c.l.b16 %v41
    %v104 = vunpack.c.l.b16 %v42
    %v105 = vunpack.c.l.b16 %v43
    %v106 = vunpack.c.l.b16 %v44
    %v107 = vunpack.c.l.b16 %v45
    %v108 = vunpack.c.l.b16 %v46
    %v109 = vunpack.c.l.b16 %v47
    %v110 = vunpack.c.l.b16 %v48
    %v111 = vunpack.c.l.b16 %v49
    %v112 = vunpack.c.l.b16 %v50
    %v113 = vunpack.c.l.b16 %v51
    %v114 = vunpack.c.l.b16 %v52
    %v115 = vpack.c.b16 %v100, %v99
    %v116 = vpack.c.b16 %v102, %v101
    %v117 = vpack.c.b16 %v104, %v103
    %v118 = vpack.c.b16 %v106, %v105
    %v119 = vpack.c.b16 %v108, %v107
    %v120 = vpack.c.b16 %v110, %v109
    %v121 = vpack.c.b16 %v112, %v111
    %v122 = vpack.c.b16 %v114, %v113
    %v131 = vunpack.c.l.b16 %v53
    %v132 = vunpack.c.h.b16 %v53
    %v133 = vunpack.c.l.b16 %v54
    %v134 = vunpack.c.h.b16 %v54
    %v135 = vunpack.c.l.b16 %v55
    %v136 = vunpack.c.h.b16 %v55
    %v137 = vunpack.c.l.b16 %v56
    %v138 = vunpack.c.h.b16 %v56
    %v139 = vunpack.c.l.b16 %v57
    %v140 = vunpack.c.h.b16 %v57
    %v141 = vunpack.c.l.b16 %v58
    %v142 = vunpack.c.h.b16 %v58
    %v143 = vunpack.c.l.b16 %v59
    %v144 = vunpack.c.h.b16 %v59
    %v145 = vunpack.c.l.b16 %v60
    %v146 = vunpack.c.h.b16 %v60
    %v147 = vpack.c.b16 %v135, %v131
    %v148 = vpack.c.b16 %v136, %v132
    %v149 = vpack.c.b16 %v137, %v133
    %v150 = vpack.c.b16 %v138, %v134
    %v151 = vpack.c.b16 %v143, %v139
    %v152 = vpack.c.b16 %v144, %v140
    %v153 = vpack.c.b16 %v145, %v141
    %v154 = vpack.c.b16 %v146, %v142
    %vm163 = vcmask 261120
    %v165 = vsel %vm163, %v115, 0
    %v168 = vsel %vm163, %v116, 0
    %v171 = vsel %vm163, %v117, 0
    %v174 = vsel %vm163, %v118, 0
    %v177 = vsel %vm163, %v119, 0
    %v180 = vsel %vm163, %v120, 0
    %v183 = vsel %vm163, %v121, 0
    %v186 = vsel %vm163, %v122, 0
    %188 = vmatprep.subr.bf16.mxu0 %v148
    %189 = vmatpush1.bf16.msra.mxu0 %v147
    %190 = vmatprep.subr.bf16.mxu0 %v152
    %191 = vmatpush1.bf16.msra.mxu0 %v151
    %192 = vmatprep.subr.bf16.mxu0 0
    %193 = vmatpush1.bf16.msra.mxu0 0
    %194 = vmatprep.subr.bf16.mxu0 0
    %195 = vmatpush1.bf16.msra.mxu0 0
    %196 = vmatprep.subr.bf16.mxu0 0
    %197 = vmatpush1.bf16.msra.mxu0 0
    %198 = vmatprep.subr.bf16.mxu0 0
    %199 = vmatpush1.bf16.msra.mxu0 0
    %200 = vmatprep.subr.bf16.mxu0 0
    %201 = vmatpush1.bf16.msra.mxu0 0
    %202 = vmatprep.subr.bf16.mxu0 0
    %203 = vmatpush1.bf16.msra.mxu0 0
    %204 = vmatprep.subr.bf16.mxu0 0
    %205 = vmatpush1.bf16.msra.mxu0 0
    %206 = vmatprep.subr.bf16.mxu0 0
    %207 = vmatpush1.bf16.msra.mxu0 0
    %208 = vmatprep.subr.bf16.mxu0 0
    %209 = vmatpush1.bf16.msra.mxu0 0
    %210 = vmatprep.subr.bf16.mxu0 0
    %211 = vmatpush1.bf16.msra.mxu0 0
    %212 = vmatprep.subr.bf16.mxu0 0
    %213 = vmatpush1.bf16.msra.mxu0 0
    %214 = vmatprep.subr.bf16.mxu0 0
    %215 = vmatpush1.bf16.msra.mxu0 0
    %216 = vmatprep.subr.bf16.mxu0 0
    %217 = vmatpush1.bf16.msra.mxu0 0
    %218 = vmatprep.subr.bf16.mxu0 0
    %219 = vmatpush1.bf16.msra.mxu0 0
    %220 = vmatprep.mubr.bf16.mxu0 0
    %221 = vmatmul.mubr.bf16.gmra.mrb[0].mxu0 %v165
    %v222 = vpop.f32.mrb[0].mxu0
    %v223 = vadd.f32 %v66, %v222
    %v224 = vpop.f32.mrb[0].mxu0
    %v225 = vadd.f32 %v70, %v224
    %v226 = vpop.f32.mrb[0].mxu0
    %v227 = vadd.f32 %v66, %v226
    %v228 = vpop.f32.mrb[0].mxu0
    %v229 = vadd.f32 %v70, %v228
    %230 = vmatprep.mubr.bf16.mxu0 0
    %231 = vmatmul.mubr.bf16.gmra.mrb[0].mxu0 %v168
    %v232 = vpop.f32.mrb[0].mxu0
    %v233 = vadd.f32 %v66, %v232
    %v234 = vpop.f32.mrb[0].mxu0
    %v235 = vadd.f32 %v70, %v234
    %v236 = vpop.f32.mrb[0].mxu0
    %v237 = vadd.f32 %v66, %v236
    %v238 = vpop.f32.mrb[0].mxu0
    %v239 = vadd.f32 %v70, %v238
    %240 = vmatprep.mubr.bf16.mxu0 0
    %241 = vmatmul.mubr.bf16.gmra.mrb[0].mxu0 %v171
    %v242 = vpop.f32.mrb[0].mxu0
    %v243 = vadd.f32 %v66, %v242
    %v244 = vpop.f32.mrb[0].mxu0
    %v245 = vadd.f32 %v70, %v244
    %v246 = vpop.f32.mrb[0].mxu0
    %v247 = vadd.f32 %v66, %v246
    %v248 = vpop.f32.mrb[0].mxu0
    %v249 = vadd.f32 %v70, %v248
    %250 = vmatprep.mubr.bf16.mxu0 0
    %251 = vmatmul.mubr.bf16.gmra.mrb[0].mxu0 %v174
    %v252 = vpop.f32.mrb[0].mxu0
    %v253 = vadd.f32 %v66, %v252
    %v254 = vpop.f32.mrb[0].mxu0
    %v255 = vadd.f32 %v70, %v254
    %v256 = vpop.f32.mrb[0].mxu0
    %v257 = vadd.f32 %v66, %v256
    %v258 = vpop.f32.mrb[0].mxu0
    %v259 = vadd.f32 %v70, %v258
    %260 = vmatprep.mubr.bf16.mxu0 0
    %261 = vmatmul.mubr.bf16.gmra.mrb[0].mxu0 %v177
    %v262 = vpop.f32.mrb[0].mxu0
    %v263 = vadd.f32 %v66, %v262
    %v264 = vpop.f32.mrb[0].mxu0
    %v265 = vadd.f32 %v70, %v264
    %v266 = vpop.f32.mrb[0].mxu0
    %v267 = vadd.f32 %v66, %v266
    %v268 = vpop.f32.mrb[0].mxu0
    %v269 = vadd.f32 %v70, %v268
    %270 = vmatprep.mubr.bf16.mxu0 0
    %271 = vmatmul.mubr.bf16.gmra.mrb[0].mxu0 %v180
    %v272 = vpop.f32.mrb[0].mxu0
    %v273 = vadd.f32 %v66, %v272
    %v274 = vpop.f32.mrb[0].mxu0
    %v275 = vadd.f32 %v70, %v274
    %v276 = vpop.f32.mrb[0].mxu0
    %v277 = vadd.f32 %v66, %v276
    %v278 = vpop.f32.mrb[0].mxu0
    %v279 = vadd.f32 %v70, %v278
    %280 = vmatprep.mubr.bf16.mxu0 0
    %281 = vmatmul.mubr.bf16.gmra.mrb[0].mxu0 %v183
    %v282 = vpop.f32.mrb[0].mxu0
    %v283 = vadd.f32 %v66, %v282
    %v284 = vpop.f32.mrb[0].mxu0
    %v285 = vadd.f32 %v70, %v284
    %v286 = vpop.f32.mrb[0].mxu0
    %v287 = vadd.f32 %v66, %v286
    %v288 = vpop.f32.mrb[0].mxu0
    %v289 = vadd.f32 %v70, %v288
    %290 = vmatprep.mubr.bf16.mxu0 0
    %291 = vmatmul.mubr.bf16.gmra.mrb[0].mxu0 %v186
    %v292 = vpop.f32.mrb[0].mxu0
    %v293 = vadd.f32 %v66, %v292
    %v294 = vpop.f32.mrb[0].mxu0
    %v295 = vadd.f32 %v70, %v294
    %v296 = vpop.f32.mrb[0].mxu0
    %v297 = vadd.f32 %v66, %v296
    %v298 = vpop.f32.mrb[0].mxu0
    %v299 = vadd.f32 %v70, %v298
    %300 = vdwg.mxu0
    %301 = vmatprep.subr.bf16.mxu0 %v150
    %302 = vmatpush1.bf16.msra.mxu0 %v149
    %303 = vmatprep.subr.bf16.mxu0 %v154
    %304 = vmatpush1.bf16.msra.mxu0 %v153
    %305 = vmatprep.subr.bf16.mxu0 0
    %306 = vmatpush1.bf16.msra.mxu0 0
    %307 = vmatprep.subr.bf16.mxu0 0
    %308 = vmatpush1.bf16.msra.mxu0 0
    %309 = vmatprep.subr.bf16.mxu0 0
    %310 = vmatpush1.bf16.msra.mxu0 0
    %311 = vmatprep.subr.bf16.mxu0 0
    %312 = vmatpush1.bf16.msra.mxu0 0
    %313 = vmatprep.subr.bf16.mxu0 0
    %314 = vmatpush1.bf16.msra.mxu0 0
    %315 = vmatprep.subr.bf16.mxu0 0
    %316 = vmatpush1.bf16.msra.mxu0 0
    %317 = vmatprep.subr.bf16.mxu0 0
    %318 = vmatpush1.bf16.msra.mxu0 0
    %319 = vmatprep.subr.bf16.mxu0 0
    %320 = vmatpush1.bf16.msra.mxu0 0
    %321 = vmatprep.subr.bf16.mxu0 0
    %322 = vmatpush1.bf16.msra.mxu0 0
    %323 = vmatprep.subr.bf16.mxu0 0
    %324 = vmatpush1.bf16.msra.mxu0 0
    %325 = vmatprep.subr.bf16.mxu0 0
    %326 = vmatpush1.bf16.msra.mxu0 0
    %327 = vmatprep.subr.bf16.mxu0 0
    %328 = vmatpush1.bf16.msra.mxu0 0
    %329 = vmatprep.subr.bf16.mxu0 0
    %330 = vmatpush1.bf16.msra.mxu0 0
    %331 = vmatprep.subr.bf16.mxu0 0
    %332 = vmatpush1.bf16.msra.mxu0 0
    %333 = vmatprep.mubr.bf16.mxu0 0
    %334 = vmatmul.mubr.bf16.gmra.mrb[0].mxu0 %v165
    %v335 = vpop.f32.mrb[0].mxu0
    %v336 = vadd.f32 %v74, %v335
    %v337 = vpop.f32.mrb[0].mxu0
    %v338 = vadd.f32 %v78, %v337
    %v339 = vpop.f32.mrb[0].mxu0
    %v340 = vadd.f32 %v74, %v339
    %v341 = vpop.f32.mrb[0].mxu0
    %v342 = vadd.f32 %v78, %v341
    %343 = vmatprep.mubr.bf16.mxu0 0
    %344 = vmatmul.mubr.bf16.gmra.mrb[0].mxu0 %v168
    %v345 = vpop.f32.mrb[0].mxu0
    %v346 = vadd.f32 %v74, %v345
    %v347 = vpop.f32.mrb[0].mxu0
    %v348 = vadd.f32 %v78, %v347
    %v349 = vpop.f32.mrb[0].mxu0
    %v350 = vadd.f32 %v74, %v349
    %v351 = vpop.f32.mrb[0].mxu0
    %v352 = vadd.f32 %v78, %v351
    %353 = vmatprep.mubr.bf16.mxu0 0
    %354 = vmatmul.mubr.bf16.gmra.mrb[0].mxu0 %v171
    %v355 = vpop.f32.mrb[0].mxu0
    %v356 = vadd.f32 %v74, %v355
    %v357 = vpop.f32.mrb[0].mxu0
    %v358 = vadd.f32 %v78, %v357
    %v359 = vpop.f32.mrb[0].mxu0
    %v360 = vadd.f32 %v74, %v359
    %v361 = vpop.f32.mrb[0].mxu0
    %v362 = vadd.f32 %v78, %v361
    %363 = vmatprep.mubr.bf16.mxu0 0
    %364 = vmatmul.mubr.bf16.gmra.mrb[0].mxu0 %v174
    %v365 = vpop.f32.mrb[0].mxu0
    %v366 = vadd.f32 %v74, %v365
    %v367 = vpop.f32.mrb[0].mxu0
    %v368 = vadd.f32 %v78, %v367
    %v369 = vpop.f32.mrb[0].mxu0
    %v370 = vadd.f32 %v74, %v369
    %v371 = vpop.f32.mrb[0].mxu0
    %v372 = vadd.f32 %v78, %v371
    %373 = vmatprep.mubr.bf16.mxu0 0
    %374 = vmatmul.mubr.bf16.gmra.mrb[0].mxu0 %v177
    %v375 = vpop.f32.mrb[0].mxu0
    %v376 = vadd.f32 %v74, %v375
    %v377 = vpop.f32.mrb[0].mxu0
    %v378 = vadd.f32 %v78, %v377
    %v379 = vpop.f32.mrb[0].mxu0
    %v380 = vadd.f32 %v74, %v379
    %v381 = vpop.f32.mrb[0].mxu0
    %v382 = vadd.f32 %v78, %v381
    %383 = vmatprep.mubr.bf16.mxu0 0
    %384 = vmatmul.mubr.bf16.gmra.mrb[0].mxu0 %v180
    %v385 = vpop.f32.mrb[0].mxu0
    %v386 = vadd.f32 %v74, %v385
    %v387 = vpop.f32.mrb[0].mxu0
    %v388 = vadd.f32 %v78, %v387
    %v389 = vpop.f32.mrb[0].mxu0
    %v390 = vadd.f32 %v74, %v389
    %v391 = vpop.f32.mrb[0].mxu0
    %v392 = vadd.f32 %v78, %v391
    %393 = vmatprep.mubr.bf16.mxu0 0
    %394 = vmatmul.mubr.bf16.gmra.mrb[0].mxu0 %v183
    %v395 = vpop.f32.mrb[0].mxu0
    %v396 = vadd.f32 %v74, %v395
    %v397 = vpop.f32.mrb[0].mxu0
    %v398 = vadd.f32 %v78, %v397
    %v399 = vpop.f32.mrb[0].mxu0
    %v400 = vadd.f32 %v74, %v399
    %v401 = vpop.f32.mrb[0].mxu0
    %v402 = vadd.f32 %v78, %v401
    %403 = vmatprep.mubr.bf16.mxu0 0
    %404 = vmatmul.mubr.bf16.gmra.mrb[0].mxu0 %v186
    %v405 = vpop.f32.mrb[0].mxu0
    %v406 = vadd.f32 %v74, %v405
    %v407 = vpop.f32.mrb[0].mxu0
    %v408 = vadd.f32 %v78, %v407
    %v409 = vpop.f32.mrb[0].mxu0
    %v410 = vadd.f32 %v74, %v409
    %v411 = vpop.f32.mrb[0].mxu0
    %v412 = vadd.f32 %v78, %v411
    %413 = vdwg.mxu0
    %v414 = vmax.f32 %v223, 0.0
    %v415 = vmax.f32 %v225, 0.0
    %v416 = vmax.f32 %v336, 0.0
    %v417 = vmax.f32 %v227, 0.0
    %v418 = vmax.f32 %v229, 0.0
    %v419 = vmax.f32 %v340, 0.0
    %v420 = vmax.f32 %v233, 0.0
    %v421 = vmax.f32 %v235, 0.0
    %v422 = vmax.f32 %v346, 0.0
    %v423 = vmax.f32 %v237, 0.0
    %v424 = vmax.f32 %v239, 0.0
    %v425 = vmax.f32 %v350, 0.0
    %v426 = vmax.f32 %v243, 0.0
    %v427 = vmax.f32 %v245, 0.0
    %v428 = vmax.f32 %v356, 0.0
    %v429 = vmax.f32 %v247, 0.0
    %v430 = vmax.f32 %v249, 0.0
    %v431 = vmax.f32 %v360, 0.0
    %v432 = vmax.f32 %v253, 0.0
    %v433 = vmax.f32 %v255, 0.0
    %v434 = vmax.f32 %v366, 0.0
    %v435 = vmax.f32 %v257, 0.0
    %v436 = vmax.f32 %v259, 0.0
    %v437 = vmax.f32 %v370, 0.0
    %v438 = vmax.f32 %v263, 0.0
    %v439 = vmax.f32 %v265, 0.0
    %v440 = vmax.f32 %v376, 0.0
    %v441 = vmax.f32 %v267, 0.0
    %v442 = vmax.f32 %v269, 0.0
    %v443 = vmax.f32 %v380, 0.0
    %v444 = vmax.f32 %v273, 0.0
    %v445 = vmax.f32 %v275, 0.0
    %v446 = vmax.f32 %v386, 0.0
    %v447 = vmax.f32 %v277, 0.0
    %v448 = vmax.f32 %v279, 0.0
    %v449 = vmax.f32 %v390, 0.0
    %v450 = vmax.f32 %v283, 0.0
    %v451 = vmax.f32 %v285, 0.0
    %v452 = vmax.f32 %v396, 0.0
    %v453 = vmax.f32 %v287, 0.0
    %v454 = vmax.f32 %v289, 0.0
    %v455 = vmax.f32 %v400, 0.0
    %v456 = vmax.f32 %v293, 0.0
    %v457 = vmax.f32 %v295, 0.0
    %v458 = vmax.f32 %v406, 0.0
    %v459 = vmax.f32 %v297, 0.0
    %v460 = vmax.f32 %v299, 0.0
    %v461 = vmax.f32 %v410, 0.0
    %v462 = vpack.c.bf16 %v417, %v414
    %v463 = vpack.c.bf16 %v418, %v415
    %v464 = vpack.c.bf16 %v419, %v416
    %v465 = vpack.c.bf16 %v423, %v420
    %v466 = vpack.c.bf16 %v424, %v421
    %v467 = vpack.c.bf16 %v425, %v422
    %v468 = vpack.c.bf16 %v429, %v426
    %v469 = vpack.c.bf16 %v430, %v427
    %v470 = vpack.c.bf16 %v431, %v428
    %v471 = vpack.c.bf16 %v435, %v432
    %v472 = vpack.c.bf16 %v436, %v433
    %v473 = vpack.c.bf16 %v437, %v434
    %v474 = vpack.c.bf16 %v441, %v438
    %v475 = vpack.c.bf16 %v442, %v439
    %v476 = vpack.c.bf16 %v443, %v440
    %v477 = vpack.c.bf16 %v447, %v444
    %v478 = vpack.c.bf16 %v448, %v445
    %v479 = vpack.c.bf16 %v449, %v446
    %v480 = vpack.c.bf16 %v453, %v450
    %v481 = vpack.c.bf16 %v454, %v451
    %v482 = vpack.c.bf16 %v455, %v452
    %v483 = vpack.c.bf16 %v459, %v456
    %v484 = vpack.c.bf16 %v460, %v457
    %v485 = vpack.c.bf16 %v461, %v458
    %vm486 = vcmask 244736
    %v487 = vsel %vm486, %v338, -inf
    %488 = vmax.xlane.f32.xlu0 %v487
    %v489 = vpop.xlane.xlu0 %488
    %v490 = vsel %vm486, %v342, -inf
    %491 = vmax.xlane.f32.xlu0 %v490
    %v492 = vpop.xlane.xlu0 %491
    %v493 = vsel %vm486, %v348, -inf
    %494 = vmax.xlane.f32.xlu0 %v493
    %v495 = vpop.xlane.xlu0 %494
    %v496 = vsel %vm486, %v352, -inf
    %497 = vmax.xlane.f32.xlu0 %v496
    %v498 = vpop.xlane.xlu0 %497
    %v499 = vsel %vm486, %v358, -inf
    %500 = vmax.xlane.f32.xlu0 %v499
    %v501 = vpop.xlane.xlu0 %500
    %v502 = vsel %vm486, %v362, -inf
    %503 = vmax.xlane.f32.xlu0 %v502
    %v504 = vpop.xlane.xlu0 %503
    %v505 = vsel %vm486, %v368, -inf
    %506 = vmax.xlane.f32.xlu0 %v505
    %v507 = vpop.xlane.xlu0 %506
    %v508 = vsel %vm486, %v372, -inf
    %509 = vmax.xlane.f32.xlu0 %v508
    %v510 = vpop.xlane.xlu0 %509
    %v511 = vsel %vm486, %v378, -inf
    %512 = vmax.xlane.f32.xlu0 %v511
    %v513 = vpop.xlane.xlu0 %512
    %v514 = vsel %vm486, %v382, -inf
    %515 = vmax.xlane.f32.xlu0 %v514
    %v516 = vpop.xlane.xlu0 %515
    %v517 = vsel %vm486, %v388, -inf
    %518 = vmax.xlane.f32.xlu0 %v517
    %v519 = vpop.xlane.xlu0 %518
    %v520 = vsel %vm486, %v392, -inf
    %521 = vmax.xlane.f32.xlu0 %v520
    %v522 = vpop.xlane.xlu0 %521
    %v523 = vsel %vm486, %v398, -inf
    %524 = vmax.xlane.f32.xlu0 %v523
    %v525 = vpop.xlane.xlu0 %524
    %v526 = vsel %vm486, %v402, -inf
    %527 = vmax.xlane.f32.xlu0 %v526
    %v528 = vpop.xlane.xlu0 %527
    %v529 = vsel %vm486, %v408, -inf
    %530 = vmax.xlane.f32.xlu0 %v529
    %v531 = vpop.xlane.xlu0 %530
    %v532 = vsel %vm486, %v412, -inf
    %533 = vmax.xlane.f32.xlu0 %v532
    %v534 = vpop.xlane.xlu0 %533
    %v535 = vsub.f32 %v338, %v489
    %v536 = vsub.f32 %v342, %v492
    %v537 = vsub.f32 %v348, %v495
    %v538 = vsub.f32 %v352, %v498
    %v539 = vsub.f32 %v358, %v501
    %v540 = vsub.f32 %v362, %v504
    %v541 = vsub.f32 %v368, %v507
    %v542 = vsub.f32 %v372, %v510
    %v543 = vsub.f32 %v378, %v513
    %v544 = vsub.f32 %v382, %v516
    %v545 = vsub.f32 %v388, %v519
    %v546 = vsub.f32 %v392, %v522
    %v547 = vsub.f32 %v398, %v525
    %v548 = vsub.f32 %v402, %v528
    %v549 = vsub.f32 %v408, %v531
    %v550 = vsub.f32 %v412, %v534
    %v551 = vmax.f32 %v535, -60.0
    %v552 = vmax.f32 %v536, -60.0
    %v553 = vmax.f32 %v537, -60.0
    %v554 = vmax.f32 %v538, -60.0
    %v555 = vmax.f32 %v539, -60.0
    %v556 = vmax.f32 %v540, -60.0
    %v557 = vmax.f32 %v541, -60.0
    %v558 = vmax.f32 %v542, -60.0
    %v559 = vmax.f32 %v543, -60.0
    %v560 = vmax.f32 %v544, -60.0
    %v561 = vmax.f32 %v545, -60.0
    %v562 = vmax.f32 %v546, -60.0
    %v563 = vmax.f32 %v547, -60.0
    %v564 = vmax.f32 %v548, -60.0
    %v565 = vmax.f32 %v549, -60.0
    %v566 = vmax.f32 %v550, -60.0
    %v567 = vmul.f32 %v551, 1.442695
    %v568 = vpow.pop %v567
    %v569 = vmul.f32 %v552, 1.442695
    %v570 = vpow.pop %v569
    %v571 = vmul.f32 %v553, 1.442695
    %v572 = vpow.pop %v571
    %v573 = vmul.f32 %v554, 1.442695
    %v574 = vpow.pop %v573
    %v575 = vmul.f32 %v555, 1.442695
    %v576 = vpow.pop %v575
    %v577 = vmul.f32 %v556, 1.442695
    %v578 = vpow.pop %v577
    %v579 = vmul.f32 %v557, 1.442695
    %v580 = vpow.pop %v579
    %v581 = vmul.f32 %v558, 1.442695
    %v582 = vpow.pop %v581
    %v583 = vmul.f32 %v559, 1.442695
    %v584 = vpow.pop %v583
    %v585 = vmul.f32 %v560, 1.442695
    %v586 = vpow.pop %v585
    %v587 = vmul.f32 %v561, 1.442695
    %v588 = vpow.pop %v587
    %v589 = vmul.f32 %v562, 1.442695
    %v590 = vpow.pop %v589
    %v591 = vmul.f32 %v563, 1.442695
    %v592 = vpow.pop %v591
    %v593 = vmul.f32 %v564, 1.442695
    %v594 = vpow.pop %v593
    %v595 = vmul.f32 %v565, 1.442695
    %v596 = vpow.pop %v595
    %v597 = vmul.f32 %v566, 1.442695
    %v598 = vpow.pop %v597
    %v599 = vpack.c.bf16 %v570, %v568
    %v600 = vpack.c.bf16 %v574, %v572
    %v601 = vpack.c.bf16 %v578, %v576
    %v602 = vpack.c.bf16 %v582, %v580
    %v603 = vpack.c.bf16 %v586, %v584
    %v604 = vpack.c.bf16 %v590, %v588
    %v605 = vpack.c.bf16 %v594, %v592
    %v606 = vpack.c.bf16 %v598, %v596
    %v607 = vld [vmem:[%s3] sm:$0xf]
    %v608 = vld [vmem:[%s3 + $0x4] sm:$0xf]
    %v609 = vld [vmem:[%s3 + $0x8] sm:$0xf]
    %v610 = vld [vmem:[%s3 + $0xc] sm:$0x7]
    %v615 = vunpack.c.l.b16 %v607
    %v616 = vunpack.c.l.b16 %v608
    %v617 = vunpack.c.l.b16 %v609
    %v618 = vunpack.c.l.b16 %v610
    %v619 = vpack.c.b16 %v616, %v615
    %v620 = vpack.c.b16 %v618, %v617
    %v623 = vsel %vm486, %v599, 0
    %v626 = vsel %vm486, %v600, 0
    %v629 = vsel %vm486, %v601, 0
    %v632 = vsel %vm486, %v602, 0
    %v635 = vsel %vm486, %v603, 0
    %v638 = vsel %vm486, %v604, 0
    %v641 = vsel %vm486, %v605, 0
    %v644 = vsel %vm486, %v606, 0
    %vm646 = vcmask 1046528
    %v648 = vsel %vm646, %v620, 0
    %650 = vmatprep.subr.bf16.mxu0 0
    %651 = vmatpush1.bf16.msra.mxu0 %v619
    %652 = vmatprep.subr.bf16.mxu0 0
    %653 = vmatpush1.bf16.msra.mxu0 %v648
    %654 = vmatprep.subr.bf16.mxu0 0
    %655 = vmatpush1.bf16.msra.mxu0 0
    %656 = vmatprep.subr.bf16.mxu0 0
    %657 = vmatpush1.bf16.msra.mxu0 0
    %658 = vmatprep.subr.bf16.mxu0 0
    %659 = vmatpush1.bf16.msra.mxu0 0
    %660 = vmatprep.subr.bf16.mxu0 0
    %661 = vmatpush1.bf16.msra.mxu0 0
    %662 = vmatprep.subr.bf16.mxu0 0
    %663 = vmatpush1.bf16.msra.mxu0 0
    %664 = vmatprep.subr.bf16.mxu0 0
    %665 = vmatpush1.bf16.msra.mxu0 0
    %666 = vmatprep.subr.bf16.mxu0 0
    %667 = vmatpush1.bf16.msra.mxu0 0
    %668 = vmatprep.subr.bf16.mxu0 0
    %669 = vmatpush1.bf16.msra.mxu0 0
    %670 = vmatprep.subr.bf16.mxu0 0
    %671 = vmatpush1.bf16.msra.mxu0 0
    %672 = vmatprep.subr.bf16.mxu0 0
    %673 = vmatpush1.bf16.msra.mxu0 0
    %674 = vmatprep.subr.bf16.mxu0 0
    %675 = vmatpush1.bf16.msra.mxu0 0
    %676 = vmatprep.subr.bf16.mxu0 0
    %677 = vmatpush1.bf16.msra.mxu0 0
    %678 = vmatprep.subr.bf16.mxu0 0
    %679 = vmatpush1.bf16.msra.mxu0 0
    %680 = vmatprep.subr.bf16.mxu0 0
    %681 = vmatpush1.bf16.msra.mxu0 0
    %682 = vmatprep.mubr.bf16.mxu0 0
    %683 = vmatmul.mubr.bf16.gmra.mrb[0].mxu0 %v623
    %v684 = vpop.f32.mrb[0].mxu0
    %v685 = vadd.f32 0.0, %v684
    %v686 = vpop.f32.mrb[0].mxu0
    %v687 = vpop.f32.mrb[0].mxu0
    %v688 = vadd.f32 0.0, %v687
    %v689 = vpop.f32.mrb[0].mxu0
    %690 = vmatprep.mubr.bf16.mxu0 0
    %691 = vmatmul.mubr.bf16.gmra.mrb[0].mxu0 %v626
    %v692 = vpop.f32.mrb[0].mxu0
    %v693 = vadd.f32 0.0, %v692
    %v694 = vpop.f32.mrb[0].mxu0
    %v695 = vpop.f32.mrb[0].mxu0
    %v696 = vadd.f32 0.0, %v695
    %v697 = vpop.f32.mrb[0].mxu0
    %698 = vmatprep.mubr.bf16.mxu0 0
    %699 = vmatmul.mubr.bf16.gmra.mrb[0].mxu0 %v629
    %v700 = vpop.f32.mrb[0].mxu0
    %v701 = vadd.f32 0.0, %v700
    %v702 = vpop.f32.mrb[0].mxu0
    %v703 = vpop.f32.mrb[0].mxu0
    %v704 = vadd.f32 0.0, %v703
    %v705 = vpop.f32.mrb[0].mxu0
    %706 = vmatprep.mubr.bf16.mxu0 0
    %707 = vmatmul.mubr.bf16.gmra.mrb[0].mxu0 %v632
    %v708 = vpop.f32.mrb[0].mxu0
    %v709 = vadd.f32 0.0, %v708
    %v710 = vpop.f32.mrb[0].mxu0
    %v711 = vpop.f32.mrb[0].mxu0
    %v712 = vadd.f32 0.0, %v711
    %v713 = vpop.f32.mrb[0].mxu0
    %714 = vmatprep.mubr.bf16.mxu0 0
    %715 = vmatmul.mubr.bf16.gmra.mrb[0].mxu0 %v635
    %v716 = vpop.f32.mrb[0].mxu0
    %v717 = vadd.f32 0.0, %v716
    %v718 = vpop.f32.mrb[0].mxu0
    %v719 = vpop.f32.mrb[0].mxu0
    %v720 = vadd.f32 0.0, %v719
    %v721 = vpop.f32.mrb[0].mxu0
    %722 = vmatprep.mubr.bf16.mxu0 0
    %723 = vmatmul.mubr.bf16.gmra.mrb[0].mxu0 %v638
    %v724 = vpop.f32.mrb[0].mxu0
    %v725 = vadd.f32 0.0, %v724
    %v726 = vpop.f32.mrb[0].mxu0
    %v727 = vpop.f32.mrb[0].mxu0
    %v728 = vadd.f32 0.0, %v727
    %v729 = vpop.f32.mrb[0].mxu0
    %730 = vmatprep.mubr.bf16.mxu0 0
    %731 = vmatmul.mubr.bf16.gmra.mrb[0].mxu0 %v641
    %v732 = vpop.f32.mrb[0].mxu0
    %v733 = vadd.f32 0.0, %v732
    %v734 = vpop.f32.mrb[0].mxu0
    %v735 = vpop.f32.mrb[0].mxu0
    %v736 = vadd.f32 0.0, %v735
    %v737 = vpop.f32.mrb[0].mxu0
    %738 = vmatprep.mubr.bf16.mxu0 0
    %739 = vmatmul.mubr.bf16.gmra.mrb[0].mxu0 %v644
    %v740 = vpop.f32.mrb[0].mxu0
    %v741 = vadd.f32 0.0, %v740
    %v742 = vpop.f32.mrb[0].mxu0
    %v743 = vpop.f32.mrb[0].mxu0
    %v744 = vadd.f32 0.0, %v743
    %v745 = vpop.f32.mrb[0].mxu0
    %746 = vdwg.mxu0
    %v747 = vrcp.pop %v685
    %v748 = vrcp.pop %v688
    %v749 = vrcp.pop %v693
    %v750 = vrcp.pop %v696
    %v751 = vrcp.pop %v701
    %v752 = vrcp.pop %v704
    %v753 = vrcp.pop %v709
    %v754 = vrcp.pop %v712
    %v755 = vrcp.pop %v717
    %v756 = vrcp.pop %v720
    %v757 = vrcp.pop %v725
    %v758 = vrcp.pop %v728
    %v759 = vrcp.pop %v733
    %v760 = vrcp.pop %v736
    %v761 = vrcp.pop %v741
    %v762 = vrcp.pop %v744
    %v763 = vmul.f32 %v568, %v747
    %v764 = vmul.f32 %v570, %v748
    %v765 = vmul.f32 %v572, %v749
    %v766 = vmul.f32 %v574, %v750
    %v767 = vmul.f32 %v576, %v751
    %v768 = vmul.f32 %v578, %v752
    %v769 = vmul.f32 %v580, %v753
    %v770 = vmul.f32 %v582, %v754
    %v771 = vmul.f32 %v584, %v755
    %v772 = vmul.f32 %v586, %v756
    %v773 = vmul.f32 %v588, %v757
    %v774 = vmul.f32 %v590, %v758
    %v775 = vmul.f32 %v592, %v759
    %v776 = vmul.f32 %v594, %v760
    %v777 = vmul.f32 %v596, %v761
    %v778 = vmul.f32 %v598, %v762
    %v779 = vpack.c.bf16 %v764, %v763
    %v780 = vpack.c.bf16 %v766, %v765
    %v781 = vpack.c.bf16 %v768, %v767
    %v782 = vpack.c.bf16 %v770, %v769
    %v783 = vpack.c.bf16 %v772, %v771
    %v784 = vpack.c.bf16 %v774, %v773
    %v785 = vpack.c.bf16 %v776, %v775
    %v786 = vpack.c.bf16 %v778, %v777
    %v787 = vld [vmem:[%s4] sm:$0xff]
    %v788 = vld [vmem:[%s4 + $0x8] sm:$0xf]
    %v789 = vld [vmem:[%s4 + $0xc] sm:$0xff]
    %v790 = vld [vmem:[%s4 + $0x14] sm:$0xf]
    %v791 = vld [vmem:[%s4 + $0x18] sm:$0xff]
    %v792 = vld [vmem:[%s4 + $0x20] sm:$0xf]
    %v793 = vld [vmem:[%s4 + $0x24] sm:$0x77]
    %v794 = vld [vmem:[%s4 + $0x2c] sm:$0x7]
    %v803 = vunpack.c.l.b16 %v787
    %v804 = vunpack.c.h.b16 %v787
    %v805 = vunpack.c.l.b16 %v788
    %v806 = vunpack.c.l.b16 %v789
    %v807 = vunpack.c.h.b16 %v789
    %v808 = vunpack.c.l.b16 %v790
    %v809 = vunpack.c.l.b16 %v791
    %v810 = vunpack.c.h.b16 %v791
    %v811 = vunpack.c.l.b16 %v792
    %v812 = vunpack.c.l.b16 %v793
    %v813 = vunpack.c.h.b16 %v793
    %v814 = vunpack.c.l.b16 %v794
    %v815 = vpack.c.b16 %v806, %v803
    %v816 = vpack.c.b16 %v807, %v804
    %v817 = vpack.c.b16 %v808, %v805
    %v818 = vpack.c.b16 %v812, %v809
    %v819 = vpack.c.b16 %v813, %v810
    %v820 = vpack.c.b16 %v814, %v811
    %v825 = vsel %vm486, %v779, 0
    %v828 = vsel %vm486, %v780, 0
    %v831 = vsel %vm486, %v781, 0
    %v834 = vsel %vm486, %v782, 0
    %v837 = vsel %vm486, %v783, 0
    %v840 = vsel %vm486, %v784, 0
    %v843 = vsel %vm486, %v785, 0
    %v846 = vsel %vm486, %v786, 0
    %v849 = vsel %vm646, %v818, 0
    %v852 = vsel %vm646, %v819, 0
    %v855 = vsel %vm646, %v820, 0
    %857 = vmatprep.subr.bf16.mxu0 %v816
    %858 = vmatpush1.bf16.msra.mxu0 %v815
    %859 = vmatprep.subr.bf16.mxu0 %v852
    %860 = vmatpush1.bf16.msra.mxu0 %v849
    %861 = vmatprep.subr.bf16.mxu0 0
    %862 = vmatpush1.bf16.msra.mxu0 0
    %863 = vmatprep.subr.bf16.mxu0 0
    %864 = vmatpush1.bf16.msra.mxu0 0
    %865 = vmatprep.subr.bf16.mxu0 0
    %866 = vmatpush1.bf16.msra.mxu0 0
    %867 = vmatprep.subr.bf16.mxu0 0
    %868 = vmatpush1.bf16.msra.mxu0 0
    %869 = vmatprep.subr.bf16.mxu0 0
    %870 = vmatpush1.bf16.msra.mxu0 0
    %871 = vmatprep.subr.bf16.mxu0 0
    %872 = vmatpush1.bf16.msra.mxu0 0
    %873 = vmatprep.subr.bf16.mxu0 0
    %874 = vmatpush1.bf16.msra.mxu0 0
    %875 = vmatprep.subr.bf16.mxu0 0
    %876 = vmatpush1.bf16.msra.mxu0 0
    %877 = vmatprep.subr.bf16.mxu0 0
    %878 = vmatpush1.bf16.msra.mxu0 0
    %879 = vmatprep.subr.bf16.mxu0 0
    %880 = vmatpush1.bf16.msra.mxu0 0
    %881 = vmatprep.subr.bf16.mxu0 0
    %882 = vmatpush1.bf16.msra.mxu0 0
    %883 = vmatprep.subr.bf16.mxu0 0
    %884 = vmatpush1.bf16.msra.mxu0 0
    %885 = vmatprep.subr.bf16.mxu0 0
    %886 = vmatpush1.bf16.msra.mxu0 0
    %887 = vmatprep.subr.bf16.mxu0 0
    %888 = vmatpush1.bf16.msra.mxu0 0
    %889 = vmatprep.mubr.bf16.mxu0 0
    %890 = vmatmul.mubr.bf16.gmra.mrb[0].mxu0 %v825
    %v891 = vpop.f32.mrb[0].mxu0
    %v892 = vadd.f32 0.0, %v891
    %v893 = vpop.f32.mrb[0].mxu0
    %v894 = vadd.f32 0.0, %v893
    %v895 = vpop.f32.mrb[0].mxu0
    %v896 = vadd.f32 0.0, %v895
    %v897 = vpop.f32.mrb[0].mxu0
    %v898 = vadd.f32 0.0, %v897
    %899 = vmatprep.mubr.bf16.mxu0 0
    %900 = vmatmul.mubr.bf16.gmra.mrb[0].mxu0 %v828
    %v901 = vpop.f32.mrb[0].mxu0
    %v902 = vadd.f32 0.0, %v901
    %v903 = vpop.f32.mrb[0].mxu0
    %v904 = vadd.f32 0.0, %v903
    %v905 = vpop.f32.mrb[0].mxu0
    %v906 = vadd.f32 0.0, %v905
    %v907 = vpop.f32.mrb[0].mxu0
    %v908 = vadd.f32 0.0, %v907
    %909 = vmatprep.mubr.bf16.mxu0 0
    %910 = vmatmul.mubr.bf16.gmra.mrb[0].mxu0 %v831
    %v911 = vpop.f32.mrb[0].mxu0
    %v912 = vadd.f32 0.0, %v911
    %v913 = vpop.f32.mrb[0].mxu0
    %v914 = vadd.f32 0.0, %v913
    %v915 = vpop.f32.mrb[0].mxu0
    %v916 = vadd.f32 0.0, %v915
    %v917 = vpop.f32.mrb[0].mxu0
    %v918 = vadd.f32 0.0, %v917
    %919 = vmatprep.mubr.bf16.mxu0 0
    %920 = vmatmul.mubr.bf16.gmra.mrb[0].mxu0 %v834
    %v921 = vpop.f32.mrb[0].mxu0
    %v922 = vadd.f32 0.0, %v921
    %v923 = vpop.f32.mrb[0].mxu0
    %v924 = vadd.f32 0.0, %v923
    %v925 = vpop.f32.mrb[0].mxu0
    %v926 = vadd.f32 0.0, %v925
    %v927 = vpop.f32.mrb[0].mxu0
    %v928 = vadd.f32 0.0, %v927
    %929 = vmatprep.mubr.bf16.mxu0 0
    %930 = vmatmul.mubr.bf16.gmra.mrb[0].mxu0 %v837
    %v931 = vpop.f32.mrb[0].mxu0
    %v932 = vadd.f32 0.0, %v931
    %v933 = vpop.f32.mrb[0].mxu0
    %v934 = vadd.f32 0.0, %v933
    %v935 = vpop.f32.mrb[0].mxu0
    %v936 = vadd.f32 0.0, %v935
    %v937 = vpop.f32.mrb[0].mxu0
    %v938 = vadd.f32 0.0, %v937
    %939 = vmatprep.mubr.bf16.mxu0 0
    %940 = vmatmul.mubr.bf16.gmra.mrb[0].mxu0 %v840
    %v941 = vpop.f32.mrb[0].mxu0
    %v942 = vadd.f32 0.0, %v941
    %v943 = vpop.f32.mrb[0].mxu0
    %v944 = vadd.f32 0.0, %v943
    %v945 = vpop.f32.mrb[0].mxu0
    %v946 = vadd.f32 0.0, %v945
    %v947 = vpop.f32.mrb[0].mxu0
    %v948 = vadd.f32 0.0, %v947
    %949 = vmatprep.mubr.bf16.mxu0 0
    %950 = vmatmul.mubr.bf16.gmra.mrb[0].mxu0 %v843
    %v951 = vpop.f32.mrb[0].mxu0
    %v952 = vadd.f32 0.0, %v951
    %v953 = vpop.f32.mrb[0].mxu0
    %v954 = vadd.f32 0.0, %v953
    %v955 = vpop.f32.mrb[0].mxu0
    %v956 = vadd.f32 0.0, %v955
    %v957 = vpop.f32.mrb[0].mxu0
    %v958 = vadd.f32 0.0, %v957
    %959 = vmatprep.mubr.bf16.mxu0 0
    %960 = vmatmul.mubr.bf16.gmra.mrb[0].mxu0 %v846
    %v961 = vpop.f32.mrb[0].mxu0
    %v962 = vadd.f32 0.0, %v961
    %v963 = vpop.f32.mrb[0].mxu0
    %v964 = vadd.f32 0.0, %v963
    %v965 = vpop.f32.mrb[0].mxu0
    %v966 = vadd.f32 0.0, %v965
    %v967 = vpop.f32.mrb[0].mxu0
    %v968 = vadd.f32 0.0, %v967
    %969 = vdwg.mxu0
    %970 = vmatprep.subr.bf16.mxu0 0
    %971 = vmatpush1.bf16.msra.mxu0 %v817
    %972 = vmatprep.subr.bf16.mxu0 0
    %973 = vmatpush1.bf16.msra.mxu0 %v855
    %974 = vmatprep.subr.bf16.mxu0 0
    %975 = vmatpush1.bf16.msra.mxu0 0
    %976 = vmatprep.subr.bf16.mxu0 0
    %977 = vmatpush1.bf16.msra.mxu0 0
    %978 = vmatprep.subr.bf16.mxu0 0
    %979 = vmatpush1.bf16.msra.mxu0 0
    %980 = vmatprep.subr.bf16.mxu0 0
    %981 = vmatpush1.bf16.msra.mxu0 0
    %982 = vmatprep.subr.bf16.mxu0 0
    %983 = vmatpush1.bf16.msra.mxu0 0
    %984 = vmatprep.subr.bf16.mxu0 0
    %985 = vmatpush1.bf16.msra.mxu0 0
    %986 = vmatprep.subr.bf16.mxu0 0
    %987 = vmatpush1.bf16.msra.mxu0 0
    %988 = vmatprep.subr.bf16.mxu0 0
    %989 = vmatpush1.bf16.msra.mxu0 0
    %990 = vmatprep.subr.bf16.mxu0 0
    %991 = vmatpush1.bf16.msra.mxu0 0
    %992 = vmatprep.subr.bf16.mxu0 0
    %993 = vmatpush1.bf16.msra.mxu0 0
    %994 = vmatprep.subr.bf16.mxu0 0
    %995 = vmatpush1.bf16.msra.mxu0 0
    %996 = vmatprep.subr.bf16.mxu0 0
    %997 = vmatpush1.bf16.msra.mxu0 0
    %998 = vmatprep.subr.bf16.mxu0 0
    %999 = vmatpush1.bf16.msra.mxu0 0
    %1000 = vmatprep.subr.bf16.mxu0 0
    %1001 = vmatpush1.bf16.msra.mxu0 0
    %1002 = vmatprep.mubr.bf16.mxu0 0
    %1003 = vmatmul.mubr.bf16.gmra.mrb[0].mxu0 %v825
    %v1004 = vpop.f32.mrb[0].mxu0
    %v1005 = vadd.f32 0.0, %v1004
    %v1006 = vpop.f32.mrb[0].mxu0
    %v1007 = vpop.f32.mrb[0].mxu0
    %v1008 = vadd.f32 0.0, %v1007
    %v1009 = vpop.f32.mrb[0].mxu0
    %1010 = vmatprep.mubr.bf16.mxu0 0
    %1011 = vmatmul.mubr.bf16.gmra.mrb[0].mxu0 %v828
    %v1012 = vpop.f32.mrb[0].mxu0
    %v1013 = vadd.f32 0.0, %v1012
    %v1014 = vpop.f32.mrb[0].mxu0
    %v1015 = vpop.f32.mrb[0].mxu0
    %v1016 = vadd.f32 0.0, %v1015
    %v1017 = vpop.f32.mrb[0].mxu0
    %1018 = vmatprep.mubr.bf16.mxu0 0
    %1019 = vmatmul.mubr.bf16.gmra.mrb[0].mxu0 %v831
    %v1020 = vpop.f32.mrb[0].mxu0
    %v1021 = vadd.f32 0.0, %v1020
    %v1022 = vpop.f32.mrb[0].mxu0
    %v1023 = vpop.f32.mrb[0].mxu0
    %v1024 = vadd.f32 0.0, %v1023
    %v1025 = vpop.f32.mrb[0].mxu0
    %1026 = vmatprep.mubr.bf16.mxu0 0
    %1027 = vmatmul.mubr.bf16.gmra.mrb[0].mxu0 %v834
    %v1028 = vpop.f32.mrb[0].mxu0
    %v1029 = vadd.f32 0.0, %v1028
    %v1030 = vpop.f32.mrb[0].mxu0
    %v1031 = vpop.f32.mrb[0].mxu0
    %v1032 = vadd.f32 0.0, %v1031
    %v1033 = vpop.f32.mrb[0].mxu0
    %1034 = vmatprep.mubr.bf16.mxu0 0
    %1035 = vmatmul.mubr.bf16.gmra.mrb[0].mxu0 %v837
    %v1036 = vpop.f32.mrb[0].mxu0
    %v1037 = vadd.f32 0.0, %v1036
    %v1038 = vpop.f32.mrb[0].mxu0
    %v1039 = vpop.f32.mrb[0].mxu0
    %v1040 = vadd.f32 0.0, %v1039
    %v1041 = vpop.f32.mrb[0].mxu0
    %1042 = vmatprep.mubr.bf16.mxu0 0
    %1043 = vmatmul.mubr.bf16.gmra.mrb[0].mxu0 %v840
    %v1044 = vpop.f32.mrb[0].mxu0
    %v1045 = vadd.f32 0.0, %v1044
    %v1046 = vpop.f32.mrb[0].mxu0
    %v1047 = vpop.f32.mrb[0].mxu0
    %v1048 = vadd.f32 0.0, %v1047
    %v1049 = vpop.f32.mrb[0].mxu0
    %1050 = vmatprep.mubr.bf16.mxu0 0
    %1051 = vmatmul.mubr.bf16.gmra.mrb[0].mxu0 %v843
    %v1052 = vpop.f32.mrb[0].mxu0
    %v1053 = vadd.f32 0.0, %v1052
    %v1054 = vpop.f32.mrb[0].mxu0
    %v1055 = vpop.f32.mrb[0].mxu0
    %v1056 = vadd.f32 0.0, %v1055
    %v1057 = vpop.f32.mrb[0].mxu0
    %1058 = vmatprep.mubr.bf16.mxu0 0
    %1059 = vmatmul.mubr.bf16.gmra.mrb[0].mxu0 %v846
    %v1060 = vpop.f32.mrb[0].mxu0
    %v1061 = vadd.f32 0.0, %v1060
    %v1062 = vpop.f32.mrb[0].mxu0
    %v1063 = vpop.f32.mrb[0].mxu0
    %v1064 = vadd.f32 0.0, %v1063
    %v1065 = vpop.f32.mrb[0].mxu0
    %1066 = vdwg.mxu0
    %v1067 = vpack.c.bf16 %v896, %v892
    %v1068 = vpack.c.bf16 %v898, %v894
    %v1069 = vpack.c.bf16 %v1008, %v1005
    %v1070 = vpack.c.bf16 %v906, %v902
    %v1071 = vpack.c.bf16 %v908, %v904
    %v1072 = vpack.c.bf16 %v1016, %v1013
    %v1073 = vpack.c.bf16 %v916, %v912
    %v1074 = vpack.c.bf16 %v918, %v914
    %v1075 = vpack.c.bf16 %v1024, %v1021
    %v1076 = vpack.c.bf16 %v926, %v922
    %v1077 = vpack.c.bf16 %v928, %v924
    %v1078 = vpack.c.bf16 %v1032, %v1029
    %v1079 = vpack.c.bf16 %v936, %v932
    %v1080 = vpack.c.bf16 %v938, %v934
    %v1081 = vpack.c.bf16 %v1040, %v1037
    %v1082 = vpack.c.bf16 %v946, %v942
    %v1083 = vpack.c.bf16 %v948, %v944
    %v1084 = vpack.c.bf16 %v1048, %v1045
    %v1085 = vpack.c.bf16 %v956, %v952
    %v1086 = vpack.c.bf16 %v958, %v954
    %v1087 = vpack.c.bf16 %v1056, %v1053
    %v1088 = vpack.c.bf16 %v966, %v962
    %v1089 = vpack.c.bf16 %v968, %v964
    %v1090 = vpack.c.bf16 %v1064, %v1061
    %v1091 = vmul.bf16 %v1067, %v462
    %v1092 = vmul.bf16 %v1068, %v463
    %v1093 = vmul.bf16 %v1069, %v464
    %v1094 = vmul.bf16 %v1070, %v465
    %v1095 = vmul.bf16 %v1071, %v466
    %v1096 = vmul.bf16 %v1072, %v467
    %v1097 = vmul.bf16 %v1073, %v468
    %v1098 = vmul.bf16 %v1074, %v469
    %v1099 = vmul.bf16 %v1075, %v470
    %v1100 = vmul.bf16 %v1076, %v471
    %v1101 = vmul.bf16 %v1077, %v472
    %v1102 = vmul.bf16 %v1078, %v473
    %v1103 = vmul.bf16 %v1079, %v474
    %v1104 = vmul.bf16 %v1080, %v475
    %v1105 = vmul.bf16 %v1081, %v476
    %v1106 = vmul.bf16 %v1082, %v477
    %v1107 = vmul.bf16 %v1083, %v478
    %v1108 = vmul.bf16 %v1084, %v479
    %v1109 = vmul.bf16 %v1085, %v480
    %v1110 = vmul.bf16 %v1086, %v481
    %v1111 = vmul.bf16 %v1087, %v482
    %v1112 = vmul.bf16 %v1088, %v483
    %v1113 = vmul.bf16 %v1089, %v484
    %v1114 = vmul.bf16 %v1090, %v485
    %v1115 = vld [vmem:[%s5] sm:$0xf]
    %v1116 = vld [vmem:[%s5 + $0x4] sm:$0xf]
    %v1117 = vld [vmem:[%s5 + $0x8] sm:$0xf]
    %v1118 = vld [vmem:[%s5 + $0xc] sm:$0xf]
    %v1119 = vld [vmem:[%s5 + $0x10] sm:$0xf]
    %v1120 = vld [vmem:[%s5 + $0x14] sm:$0xf]
    %v1121 = vld [vmem:[%s5 + $0x18] sm:$0xf]
    %v1122 = vld [vmem:[%s5 + $0x1c] sm:$0xf]
    %v1123 = vld [vmem:[%s5 + $0x20] sm:$0xf]
    %v1124 = vld [vmem:[%s5 + $0x24] sm:$0xf]
    %v1125 = vld [vmem:[%s5 + $0x28] sm:$0xf]
    %v1126 = vld [vmem:[%s5 + $0x2c] sm:$0xf]
    %v1127 = vld [vmem:[%s5 + $0x30] sm:$0xf]
    %v1128 = vld [vmem:[%s5 + $0x34] sm:$0xf]
    %v1129 = vld [vmem:[%s5 + $0x38] sm:$0xf]
    %v1130 = vld [vmem:[%s5 + $0x3c] sm:$0xf]
    %v1131 = vld [vmem:[%s5 + $0x40] sm:$0xf]
    %v1132 = vld [vmem:[%s5 + $0x44] sm:$0xf]
    %v1133 = vld [vmem:[%s5 + $0x48] sm:$0xf]
    %v1134 = vld [vmem:[%s5 + $0x4c] sm:$0xf]
    %v1135 = vld [vmem:[%s5 + $0x50] sm:$0xf]
    %v1136 = vld [vmem:[%s5 + $0x54] sm:$0xf]
    %v1137 = vld [vmem:[%s5 + $0x58] sm:$0xf]
    %v1138 = vld [vmem:[%s5 + $0x5c] sm:$0xf]
    %v1139 = vld [vmem:[%s5 + $0x60] sm:$0xf]
    %v1140 = vld [vmem:[%s5 + $0x64] sm:$0xf]
    %v1141 = vld [vmem:[%s5 + $0x68] sm:$0xf]
    %v1142 = vld [vmem:[%s5 + $0x6c] sm:$0xf]
    %v1143 = vld [vmem:[%s5 + $0x70] sm:$0xf]
    %v1144 = vld [vmem:[%s5 + $0x74] sm:$0xf]
    %v1145 = vld [vmem:[%s5 + $0x78] sm:$0xf]
    %v1146 = vld [vmem:[%s5 + $0x7c] sm:$0xf]
    %v1147 = vld [vmem:[%s5 + $0x80] sm:$0xf]
    %v1148 = vld [vmem:[%s5 + $0x84] sm:$0xf]
    %v1149 = vld [vmem:[%s5 + $0x88] sm:$0xf]
    %v1150 = vld [vmem:[%s5 + $0x8c] sm:$0xf]
    %v1151 = vld [vmem:[%s5 + $0x90] sm:$0xf]
    %v1152 = vld [vmem:[%s5 + $0x94] sm:$0xf]
    %v1153 = vld [vmem:[%s5 + $0x98] sm:$0xf]
    %v1154 = vld [vmem:[%s5 + $0x9c] sm:$0xf]
    %v1155 = vld [vmem:[%s5 + $0xa0] sm:$0xf]
    %v1156 = vld [vmem:[%s5 + $0xa4] sm:$0xf]
    %v1157 = vld [vmem:[%s5 + $0xa8] sm:$0xf]
    %v1158 = vld [vmem:[%s5 + $0xac] sm:$0xf]
    %v1159 = vld [vmem:[%s5 + $0xb0] sm:$0xf]
    %v1160 = vld [vmem:[%s5 + $0xb4] sm:$0xf]
    %v1161 = vld [vmem:[%s5 + $0xb8] sm:$0xf]
    %v1162 = vld [vmem:[%s5 + $0xbc] sm:$0xf]
    %v1163 = vld [vmem:[%s6] sm:$0x1]
    %v1165 = vlaneseq
    %v1166 = vshrl.u32 %v1165, 7
    %v1167 = vsub.s32 0, %v1166
    %v1168 = vrot.slane %v1163, %v1167
    %v1218 = vunpack.c.l.b16 %v1115
    %v1219 = vunpack.c.l.b16 %v1116
    %v1220 = vunpack.c.l.b16 %v1117
    %v1221 = vunpack.c.l.b16 %v1118
    %v1222 = vunpack.c.l.b16 %v1119
    %v1223 = vunpack.c.l.b16 %v1120
    %v1224 = vunpack.c.l.b16 %v1121
    %v1225 = vunpack.c.l.b16 %v1122
    %v1226 = vunpack.c.l.b16 %v1123
    %v1227 = vunpack.c.l.b16 %v1124
    %v1228 = vunpack.c.l.b16 %v1125
    %v1229 = vunpack.c.l.b16 %v1126
    %v1230 = vunpack.c.l.b16 %v1127
    %v1231 = vunpack.c.l.b16 %v1128
    %v1232 = vunpack.c.l.b16 %v1129
    %v1233 = vunpack.c.l.b16 %v1130
    %v1234 = vunpack.c.l.b16 %v1131
    %v1235 = vunpack.c.l.b16 %v1132
    %v1236 = vunpack.c.l.b16 %v1133
    %v1237 = vunpack.c.l.b16 %v1134
    %v1238 = vunpack.c.l.b16 %v1135
    %v1239 = vunpack.c.l.b16 %v1136
    %v1240 = vunpack.c.l.b16 %v1137
    %v1241 = vunpack.c.l.b16 %v1138
    %v1242 = vunpack.c.l.b16 %v1139
    %v1243 = vunpack.c.l.b16 %v1140
    %v1244 = vunpack.c.l.b16 %v1141
    %v1245 = vunpack.c.l.b16 %v1142
    %v1246 = vunpack.c.l.b16 %v1143
    %v1247 = vunpack.c.l.b16 %v1144
    %v1248 = vunpack.c.l.b16 %v1145
    %v1249 = vunpack.c.l.b16 %v1146
    %v1250 = vunpack.c.l.b16 %v1147
    %v1251 = vunpack.c.l.b16 %v1148
    %v1252 = vunpack.c.l.b16 %v1149
    %v1253 = vunpack.c.l.b16 %v1150
    %v1254 = vunpack.c.l.b16 %v1151
    %v1255 = vunpack.c.l.b16 %v1152
    %v1256 = vunpack.c.l.b16 %v1153
    %v1257 = vunpack.c.l.b16 %v1154
    %v1258 = vunpack.c.l.b16 %v1155
    %v1259 = vunpack.c.l.b16 %v1156
    %v1260 = vunpack.c.l.b16 %v1157
    %v1261 = vunpack.c.l.b16 %v1158
    %v1262 = vunpack.c.l.b16 %v1159
    %v1263 = vunpack.c.l.b16 %v1160
    %v1264 = vunpack.c.l.b16 %v1161
    %v1265 = vunpack.c.l.b16 %v1162
    %v1266 = vpack.c.b16 %v1219, %v1218
    %v1267 = vpack.c.b16 %v1221, %v1220
    %v1268 = vpack.c.b16 %v1223, %v1222
    %v1269 = vpack.c.b16 %v1225, %v1224
    %v1270 = vpack.c.b16 %v1227, %v1226
    %v1271 = vpack.c.b16 %v1229, %v1228
    %v1272 = vpack.c.b16 %v1231, %v1230
    %v1273 = vpack.c.b16 %v1233, %v1232
    %v1274 = vpack.c.b16 %v1235, %v1234
    %v1275 = vpack.c.b16 %v1237, %v1236
    %v1276 = vpack.c.b16 %v1239, %v1238
    %v1277 = vpack.c.b16 %v1241, %v1240
    %v1278 = vpack.c.b16 %v1243, %v1242
    %v1279 = vpack.c.b16 %v1245, %v1244
    %v1280 = vpack.c.b16 %v1247, %v1246
    %v1281 = vpack.c.b16 %v1249, %v1248
    %v1282 = vpack.c.b16 %v1251, %v1250
    %v1283 = vpack.c.b16 %v1253, %v1252
    %v1284 = vpack.c.b16 %v1255, %v1254
    %v1285 = vpack.c.b16 %v1257, %v1256
    %v1286 = vpack.c.b16 %v1259, %v1258
    %v1287 = vpack.c.b16 %v1261, %v1260
    %v1288 = vpack.c.b16 %v1263, %v1262
    %v1289 = vpack.c.b16 %v1265, %v1264
    %1314 = vmatprep.subr.bf16.mxu0 0
    %1315 = vmatpush1.bf16.msra.mxu0 %v1266
    %1316 = vmatprep.subr.bf16.mxu0 0
    %1317 = vmatpush1.bf16.msra.mxu0 %v1267
    %1318 = vmatprep.subr.bf16.mxu0 0
    %1319 = vmatpush1.bf16.msra.mxu0 %v1268
    %1320 = vmatprep.subr.bf16.mxu0 0
    %1321 = vmatpush1.bf16.msra.mxu0 %v1269
    %1322 = vmatprep.subr.bf16.mxu0 0
    %1323 = vmatpush1.bf16.msra.mxu0 %v1270
    %1324 = vmatprep.subr.bf16.mxu0 0
    %1325 = vmatpush1.bf16.msra.mxu0 %v1271
    %1326 = vmatprep.subr.bf16.mxu0 0
    %1327 = vmatpush1.bf16.msra.mxu0 %v1272
    %1328 = vmatprep.subr.bf16.mxu0 0
    %1329 = vmatpush1.bf16.msra.mxu0 %v1273
    %1330 = vmatprep.subr.bf16.mxu0 0
    %1331 = vmatpush1.bf16.msra.mxu0 %v1274
    %1332 = vmatprep.subr.bf16.mxu0 0
    %1333 = vmatpush1.bf16.msra.mxu0 %v1275
    %1334 = vmatprep.subr.bf16.mxu0 0
    %1335 = vmatpush1.bf16.msra.mxu0 %v1276
    %1336 = vmatprep.subr.bf16.mxu0 0
    %1337 = vmatpush1.bf16.msra.mxu0 %v1277
    %1338 = vmatprep.subr.bf16.mxu0 0
    %1339 = vmatpush1.bf16.msra.mxu0 %v1278
    %1340 = vmatprep.subr.bf16.mxu0 0
    %1341 = vmatpush1.bf16.msra.mxu0 %v1279
    %1342 = vmatprep.subr.bf16.mxu0 0
    %1343 = vmatpush1.bf16.msra.mxu0 %v1280
    %1344 = vmatprep.subr.bf16.mxu0 0
    %1345 = vmatpush1.bf16.msra.mxu0 %v1281
    %1346 = vmatprep.mubr.bf16.mxu0 %v1092
    %1347 = vmatmul.mubr.bf16.gmra.mrb[0].mxu0 %v1091
    %v1348 = vpop.f32.mrb[0].mxu0
    %v1349 = vadd.f32 %v1168, %v1348
    %v1350 = vpop.f32.mrb[0].mxu0
    %v1351 = vpop.f32.mrb[0].mxu0
    %v1352 = vadd.f32 %v1168, %v1351
    %v1353 = vpop.f32.mrb[0].mxu0
    %1354 = vmatprep.mubr.bf16.mxu0 %v1095
    %1355 = vmatmul.mubr.bf16.gmra.mrb[0].mxu0 %v1094
    %v1356 = vpop.f32.mrb[0].mxu0
    %v1357 = vadd.f32 %v1168, %v1356
    %v1358 = vpop.f32.mrb[0].mxu0
    %v1359 = vpop.f32.mrb[0].mxu0
    %v1360 = vadd.f32 %v1168, %v1359
    %v1361 = vpop.f32.mrb[0].mxu0
    %1362 = vmatprep.mubr.bf16.mxu0 %v1098
    %1363 = vmatmul.mubr.bf16.gmra.mrb[0].mxu0 %v1097
    %v1364 = vpop.f32.mrb[0].mxu0
    %v1365 = vadd.f32 %v1168, %v1364
    %v1366 = vpop.f32.mrb[0].mxu0
    %v1367 = vpop.f32.mrb[0].mxu0
    %v1368 = vadd.f32 %v1168, %v1367
    %v1369 = vpop.f32.mrb[0].mxu0
    %1370 = vmatprep.mubr.bf16.mxu0 %v1101
    %1371 = vmatmul.mubr.bf16.gmra.mrb[0].mxu0 %v1100
    %v1372 = vpop.f32.mrb[0].mxu0
    %v1373 = vadd.f32 %v1168, %v1372
    %v1374 = vpop.f32.mrb[0].mxu0
    %v1375 = vpop.f32.mrb[0].mxu0
    %v1376 = vadd.f32 %v1168, %v1375
    %v1377 = vpop.f32.mrb[0].mxu0
    %1378 = vmatprep.mubr.bf16.mxu0 %v1104
    %1379 = vmatmul.mubr.bf16.gmra.mrb[0].mxu0 %v1103
    %v1380 = vpop.f32.mrb[0].mxu0
    %v1381 = vadd.f32 %v1168, %v1380
    %v1382 = vpop.f32.mrb[0].mxu0
    %v1383 = vpop.f32.mrb[0].mxu0
    %v1384 = vadd.f32 %v1168, %v1383
    %v1385 = vpop.f32.mrb[0].mxu0
    %1386 = vmatprep.mubr.bf16.mxu0 %v1107
    %1387 = vmatmul.mubr.bf16.gmra.mrb[0].mxu0 %v1106
    %v1388 = vpop.f32.mrb[0].mxu0
    %v1389 = vadd.f32 %v1168, %v1388
    %v1390 = vpop.f32.mrb[0].mxu0
    %v1391 = vpop.f32.mrb[0].mxu0
    %v1392 = vadd.f32 %v1168, %v1391
    %v1393 = vpop.f32.mrb[0].mxu0
    %1394 = vmatprep.mubr.bf16.mxu0 %v1110
    %1395 = vmatmul.mubr.bf16.gmra.mrb[0].mxu0 %v1109
    %v1396 = vpop.f32.mrb[0].mxu0
    %v1397 = vadd.f32 %v1168, %v1396
    %v1398 = vpop.f32.mrb[0].mxu0
    %v1399 = vpop.f32.mrb[0].mxu0
    %v1400 = vadd.f32 %v1168, %v1399
    %v1401 = vpop.f32.mrb[0].mxu0
    %1402 = vmatprep.mubr.bf16.mxu0 %v1113
    %1403 = vmatmul.mubr.bf16.gmra.mrb[0].mxu0 %v1112
    %v1404 = vpop.f32.mrb[0].mxu0
    %v1405 = vadd.f32 %v1168, %v1404
    %v1406 = vpop.f32.mrb[0].mxu0
    %v1407 = vpop.f32.mrb[0].mxu0
    %v1408 = vadd.f32 %v1168, %v1407
    %v1409 = vpop.f32.mrb[0].mxu0
    %1410 = vdwg.mxu0
    %1411 = vmatprep.subr.bf16.mxu0 0
    %1412 = vmatpush1.bf16.msra.mxu0 %v1282
    %1413 = vmatprep.subr.bf16.mxu0 0
    %1414 = vmatpush1.bf16.msra.mxu0 %v1283
    %1415 = vmatprep.subr.bf16.mxu0 0
    %1416 = vmatpush1.bf16.msra.mxu0 %v1284
    %1417 = vmatprep.subr.bf16.mxu0 0
    %1418 = vmatpush1.bf16.msra.mxu0 %v1285
    %1419 = vmatprep.subr.bf16.mxu0 0
    %1420 = vmatpush1.bf16.msra.mxu0 %v1286
    %1421 = vmatprep.subr.bf16.mxu0 0
    %1422 = vmatpush1.bf16.msra.mxu0 %v1287
    %1423 = vmatprep.subr.bf16.mxu0 0
    %1424 = vmatpush1.bf16.msra.mxu0 %v1288
    %1425 = vmatprep.subr.bf16.mxu0 0
    %1426 = vmatpush1.bf16.msra.mxu0 %v1289
    %1427 = vmatprep.subr.bf16.mxu0 0
    %1428 = vmatpush1.bf16.msra.mxu0 0
    %1429 = vmatprep.subr.bf16.mxu0 0
    %1430 = vmatpush1.bf16.msra.mxu0 0
    %1431 = vmatprep.subr.bf16.mxu0 0
    %1432 = vmatpush1.bf16.msra.mxu0 0
    %1433 = vmatprep.subr.bf16.mxu0 0
    %1434 = vmatpush1.bf16.msra.mxu0 0
    %1435 = vmatprep.subr.bf16.mxu0 0
    %1436 = vmatpush1.bf16.msra.mxu0 0
    %1437 = vmatprep.subr.bf16.mxu0 0
    %1438 = vmatpush1.bf16.msra.mxu0 0
    %1439 = vmatprep.subr.bf16.mxu0 0
    %1440 = vmatpush1.bf16.msra.mxu0 0
    %1441 = vmatprep.subr.bf16.mxu0 0
    %1442 = vmatpush1.bf16.msra.mxu0 0
    %1443 = vmatprep.mubr.bf16.mxu0 0
    %1444 = vmatmul.mubr.bf16.gmra.mrb[0].mxu0 %v1093
    %v1445 = vpop.f32.mrb[0].mxu0
    %v1446 = vadd.f32 %v1349, %v1445
    %v1447 = vpop.f32.mrb[0].mxu0
    %v1448 = vpop.f32.mrb[0].mxu0
    %v1449 = vadd.f32 %v1352, %v1448
    %v1450 = vpop.f32.mrb[0].mxu0
    %1451 = vmatprep.mubr.bf16.mxu0 0
    %1452 = vmatmul.mubr.bf16.gmra.mrb[0].mxu0 %v1096
    %v1453 = vpop.f32.mrb[0].mxu0
    %v1454 = vadd.f32 %v1357, %v1453
    %v1455 = vpop.f32.mrb[0].mxu0
    %v1456 = vpop.f32.mrb[0].mxu0
    %v1457 = vadd.f32 %v1360, %v1456
    %v1458 = vpop.f32.mrb[0].mxu0
    %1459 = vmatprep.mubr.bf16.mxu0 0
    %1460 = vmatmul.mubr.bf16.gmra.mrb[0].mxu0 %v1099
    %v1461 = vpop.f32.mrb[0].mxu0
    %v1462 = vadd.f32 %v1365, %v1461
    %v1463 = vpop.f32.mrb[0].mxu0
    %v1464 = vpop.f32.mrb[0].mxu0
    %v1465 = vadd.f32 %v1368, %v1464
    %v1466 = vpop.f32.mrb[0].mxu0
    %1467 = vmatprep.mubr.bf16.mxu0 0
    %1468 = vmatmul.mubr.bf16.gmra.mrb[0].mxu0 %v1102
    %v1469 = vpop.f32.mrb[0].mxu0
    %v1470 = vadd.f32 %v1373, %v1469
    %v1471 = vpop.f32.mrb[0].mxu0
    %v1472 = vpop.f32.mrb[0].mxu0
    %v1473 = vadd.f32 %v1376, %v1472
    %v1474 = vpop.f32.mrb[0].mxu0
    %1475 = vmatprep.mubr.bf16.mxu0 0
    %1476 = vmatmul.mubr.bf16.gmra.mrb[0].mxu0 %v1105
    %v1477 = vpop.f32.mrb[0].mxu0
    %v1478 = vadd.f32 %v1381, %v1477
    %v1479 = vpop.f32.mrb[0].mxu0
    %v1480 = vpop.f32.mrb[0].mxu0
    %v1481 = vadd.f32 %v1384, %v1480
    %v1482 = vpop.f32.mrb[0].mxu0
    %1483 = vmatprep.mubr.bf16.mxu0 0
    %1484 = vmatmul.mubr.bf16.gmra.mrb[0].mxu0 %v1108
    %v1485 = vpop.f32.mrb[0].mxu0
    %v1486 = vadd.f32 %v1389, %v1485
    %v1487 = vpop.f32.mrb[0].mxu0
    %v1488 = vpop.f32.mrb[0].mxu0
    %v1489 = vadd.f32 %v1392, %v1488
    %v1490 = vpop.f32.mrb[0].mxu0
    %1491 = vmatprep.mubr.bf16.mxu0 0
    %1492 = vmatmul.mubr.bf16.gmra.mrb[0].mxu0 %v1111
    %v1493 = vpop.f32.mrb[0].mxu0
    %v1494 = vadd.f32 %v1397, %v1493
    %v1495 = vpop.f32.mrb[0].mxu0
    %v1496 = vpop.f32.mrb[0].mxu0
    %v1497 = vadd.f32 %v1400, %v1496
    %v1498 = vpop.f32.mrb[0].mxu0
    %1499 = vmatprep.mubr.bf16.mxu0 0
    %1500 = vmatmul.mubr.bf16.gmra.mrb[0].mxu0 %v1114
    %v1501 = vpop.f32.mrb[0].mxu0
    %v1502 = vadd.f32 %v1405, %v1501
    %v1503 = vpop.f32.mrb[0].mxu0
    %v1504 = vpop.f32.mrb[0].mxu0
    %v1505 = vadd.f32 %v1408, %v1504
    %v1506 = vpop.f32.mrb[0].mxu0
    %1507 = vdwg.mxu0
    %v1508 = vmax.f32 %v1446, 0.0
    %v1509 = vmax.f32 %v1449, 0.0
    %v1510 = vmax.f32 %v1454, 0.0
    %v1511 = vmax.f32 %v1457, 0.0
    %v1512 = vmax.f32 %v1462, 0.0
    %v1513 = vmax.f32 %v1465, 0.0
    %v1514 = vmax.f32 %v1470, 0.0
    %v1515 = vmax.f32 %v1473, 0.0
    %v1516 = vmax.f32 %v1478, 0.0
    %v1517 = vmax.f32 %v1481, 0.0
    %v1518 = vmax.f32 %v1486, 0.0
    %v1519 = vmax.f32 %v1489, 0.0
    %v1520 = vmax.f32 %v1494, 0.0
    %v1521 = vmax.f32 %v1497, 0.0
    %v1522 = vmax.f32 %v1502, 0.0
    %v1523 = vmax.f32 %v1505, 0.0
    %v1524 = vpack.c.bf16 %v1509, %v1508
    %v1525 = vpack.c.bf16 %v1511, %v1510
    %v1526 = vpack.c.bf16 %v1513, %v1512
    %v1527 = vpack.c.bf16 %v1515, %v1514
    %v1528 = vpack.c.bf16 %v1517, %v1516
    %v1529 = vpack.c.bf16 %v1519, %v1518
    %v1530 = vpack.c.bf16 %v1521, %v1520
    %v1531 = vpack.c.bf16 %v1523, %v1522
    %v1532 = vld [vmem:[%s7] sm:$0xf]
    %v1533 = vld [vmem:[%s7 + $0x4] sm:$0xf]
    %v1534 = vld [vmem:[%s7 + $0x8] sm:$0xf]
    %v1535 = vld [vmem:[%s7 + $0xc] sm:$0xf]
    %v1536 = vld [vmem:[%s7 + $0x10] sm:$0xf]
    %v1537 = vld [vmem:[%s7 + $0x14] sm:$0xf]
    %v1538 = vld [vmem:[%s8] sm:$0x1]
    %v1540 = vlaneseq
    %v1541 = vshrl.u32 %v1540, 7
    %v1542 = vsub.s32 0, %v1541
    %v1543 = vrot.slane %v1538, %v1542
    %v1551 = vunpack.c.l.b16 %v1532
    %v1552 = vunpack.c.l.b16 %v1533
    %v1553 = vunpack.c.l.b16 %v1534
    %v1554 = vunpack.c.l.b16 %v1535
    %v1555 = vunpack.c.l.b16 %v1536
    %v1556 = vunpack.c.l.b16 %v1537
    %v1557 = vpack.c.b16 %v1552, %v1551
    %v1558 = vpack.c.b16 %v1554, %v1553
    %v1559 = vpack.c.b16 %v1556, %v1555
    %vm1563 = vcmask 392192
    %v1565 = vsel %vm1563, %v1524, 0
    %v1568 = vsel %vm1563, %v1525, 0
    %v1571 = vsel %vm1563, %v1526, 0
    %v1574 = vsel %vm1563, %v1527, 0
    %v1577 = vsel %vm1563, %v1528, 0
    %v1580 = vsel %vm1563, %v1529, 0
    %v1583 = vsel %vm1563, %v1530, 0
    %v1586 = vsel %vm1563, %v1531, 0
    %1588 = vmatprep.subr.bf16.mxu0 0
    %1589 = vmatpush1.bf16.msra.mxu0 %v1557
    %1590 = vmatprep.subr.bf16.mxu0 0
    %1591 = vmatpush1.bf16.msra.mxu0 %v1558
    %1592 = vmatprep.subr.bf16.mxu0 0
    %1593 = vmatpush1.bf16.msra.mxu0 %v1559
    %1594 = vmatprep.subr.bf16.mxu0 0
    %1595 = vmatpush1.bf16.msra.mxu0 0
    %1596 = vmatprep.subr.bf16.mxu0 0
    %1597 = vmatpush1.bf16.msra.mxu0 0
    %1598 = vmatprep.subr.bf16.mxu0 0
    %1599 = vmatpush1.bf16.msra.mxu0 0
    %1600 = vmatprep.subr.bf16.mxu0 0
    %1601 = vmatpush1.bf16.msra.mxu0 0
    %1602 = vmatprep.subr.bf16.mxu0 0
    %1603 = vmatpush1.bf16.msra.mxu0 0
    %1604 = vmatprep.subr.bf16.mxu0 0
    %1605 = vmatpush1.bf16.msra.mxu0 0
    %1606 = vmatprep.subr.bf16.mxu0 0
    %1607 = vmatpush1.bf16.msra.mxu0 0
    %1608 = vmatprep.subr.bf16.mxu0 0
    %1609 = vmatpush1.bf16.msra.mxu0 0
    %1610 = vmatprep.subr.bf16.mxu0 0
    %1611 = vmatpush1.bf16.msra.mxu0 0
    %1612 = vmatprep.subr.bf16.mxu0 0
    %1613 = vmatpush1.bf16.msra.mxu0 0
    %1614 = vmatprep.subr.bf16.mxu0 0
    %1615 = vmatpush1.bf16.msra.mxu0 0
    %1616 = vmatprep.subr.bf16.mxu0 0
    %1617 = vmatpush1.bf16.msra.mxu0 0
    %1618 = vmatprep.subr.bf16.mxu0 0
    %1619 = vmatpush1.bf16.msra.mxu0 0
    %1620 = vmatprep.mubr.bf16.mxu0 0
    %1621 = vmatmul.mubr.bf16.gmra.mrb[0].mxu0 %v1565
    %v1622 = vpop.f32.mrb[0].mxu0
    %v1623 = vadd.f32 %v1543, %v1622
    %v1624 = vpop.f32.mrb[0].mxu0
    %v1625 = vpop.f32.mrb[0].mxu0
    %v1626 = vadd.f32 %v1543, %v1625
    %v1627 = vpop.f32.mrb[0].mxu0
    %1628 = vmatprep.mubr.bf16.mxu0 0
    %1629 = vmatmul.mubr.bf16.gmra.mrb[0].mxu0 %v1568
    %v1630 = vpop.f32.mrb[0].mxu0
    %v1631 = vadd.f32 %v1543, %v1630
    %v1632 = vpop.f32.mrb[0].mxu0
    %v1633 = vpop.f32.mrb[0].mxu0
    %v1634 = vadd.f32 %v1543, %v1633
    %v1635 = vpop.f32.mrb[0].mxu0
    %1636 = vmatprep.mubr.bf16.mxu0 0
    %1637 = vmatmul.mubr.bf16.gmra.mrb[0].mxu0 %v1571
    %v1638 = vpop.f32.mrb[0].mxu0
    %v1639 = vadd.f32 %v1543, %v1638
    %v1640 = vpop.f32.mrb[0].mxu0
    %v1641 = vpop.f32.mrb[0].mxu0
    %v1642 = vadd.f32 %v1543, %v1641
    %v1643 = vpop.f32.mrb[0].mxu0
    %1644 = vmatprep.mubr.bf16.mxu0 0
    %1645 = vmatmul.mubr.bf16.gmra.mrb[0].mxu0 %v1574
    %v1646 = vpop.f32.mrb[0].mxu0
    %v1647 = vadd.f32 %v1543, %v1646
    %v1648 = vpop.f32.mrb[0].mxu0
    %v1649 = vpop.f32.mrb[0].mxu0
    %v1650 = vadd.f32 %v1543, %v1649
    %v1651 = vpop.f32.mrb[0].mxu0
    %1652 = vmatprep.mubr.bf16.mxu0 0
    %1653 = vmatmul.mubr.bf16.gmra.mrb[0].mxu0 %v1577
    %v1654 = vpop.f32.mrb[0].mxu0
    %v1655 = vadd.f32 %v1543, %v1654
    %v1656 = vpop.f32.mrb[0].mxu0
    %v1657 = vpop.f32.mrb[0].mxu0
    %v1658 = vadd.f32 %v1543, %v1657
    %v1659 = vpop.f32.mrb[0].mxu0
    %1660 = vmatprep.mubr.bf16.mxu0 0
    %1661 = vmatmul.mubr.bf16.gmra.mrb[0].mxu0 %v1580
    %v1662 = vpop.f32.mrb[0].mxu0
    %v1663 = vadd.f32 %v1543, %v1662
    %v1664 = vpop.f32.mrb[0].mxu0
    %v1665 = vpop.f32.mrb[0].mxu0
    %v1666 = vadd.f32 %v1543, %v1665
    %v1667 = vpop.f32.mrb[0].mxu0
    %1668 = vmatprep.mubr.bf16.mxu0 0
    %1669 = vmatmul.mubr.bf16.gmra.mrb[0].mxu0 %v1583
    %v1670 = vpop.f32.mrb[0].mxu0
    %v1671 = vadd.f32 %v1543, %v1670
    %v1672 = vpop.f32.mrb[0].mxu0
    %v1673 = vpop.f32.mrb[0].mxu0
    %v1674 = vadd.f32 %v1543, %v1673
    %v1675 = vpop.f32.mrb[0].mxu0
    %1676 = vmatprep.mubr.bf16.mxu0 0
    %1677 = vmatmul.mubr.bf16.gmra.mrb[0].mxu0 %v1586
    %v1678 = vpop.f32.mrb[0].mxu0
    %v1679 = vadd.f32 %v1543, %v1678
    %v1680 = vpop.f32.mrb[0].mxu0
    %v1681 = vpop.f32.mrb[0].mxu0
    %v1682 = vadd.f32 %v1543, %v1681
    %v1683 = vpop.f32.mrb[0].mxu0
    %1684 = vdwg.mxu0
    %v1685 = vunpack.c.l.bf16 %v779
    %v1686 = vunpack.c.h.bf16 %v779
    %v1687 = vunpack.c.l.bf16 %v780
    %v1688 = vunpack.c.h.bf16 %v780
    %v1689 = vunpack.c.l.bf16 %v781
    %v1690 = vunpack.c.h.bf16 %v781
    %v1691 = vunpack.c.l.bf16 %v782
    %v1692 = vunpack.c.h.bf16 %v782
    %v1693 = vunpack.c.l.bf16 %v783
    %v1694 = vunpack.c.h.bf16 %v783
    %v1695 = vunpack.c.l.bf16 %v784
    %v1696 = vunpack.c.h.bf16 %v784
    %v1697 = vunpack.c.l.bf16 %v785
    %v1698 = vunpack.c.h.bf16 %v785
    %v1699 = vunpack.c.l.bf16 %v786
    %v1700 = vunpack.c.h.bf16 %v786
    %v1701 = vmul.f32 %v1685, %v1623
    %v1702 = vmul.f32 %v1686, %v1626
    %v1703 = vmul.f32 %v1687, %v1631
    %v1704 = vmul.f32 %v1688, %v1634
    %v1705 = vmul.f32 %v1689, %v1639
    %v1706 = vmul.f32 %v1690, %v1642
    %v1707 = vmul.f32 %v1691, %v1647
    %v1708 = vmul.f32 %v1692, %v1650
    %v1709 = vmul.f32 %v1693, %v1655
    %v1710 = vmul.f32 %v1694, %v1658
    %v1711 = vmul.f32 %v1695, %v1663
    %v1712 = vmul.f32 %v1696, %v1666
    %v1713 = vmul.f32 %v1697, %v1671
    %v1714 = vmul.f32 %v1698, %v1674
    %v1715 = vmul.f32 %v1699, %v1679
    %v1716 = vmul.f32 %v1700, %v1682
    %v1717 = vpack.c.bf16 %v1702, %v1701
    %v1718 = vpack.c.bf16 %v1704, %v1703
    %v1719 = vpack.c.bf16 %v1706, %v1705
    %v1720 = vpack.c.bf16 %v1708, %v1707
    %v1721 = vpack.c.bf16 %v1710, %v1709
    %v1722 = vpack.c.bf16 %v1712, %v1711
    %v1723 = vpack.c.bf16 %v1714, %v1713
    %v1724 = vpack.c.bf16 %v1716, %v1715
    %v1725 = vld [vmem:[%s9] sm:$0x7]
    %vm1726 = vcmask 48128
    %v1728 = vsel %vm1726, %v1717, 0
    %v1731 = vsel %vm1726, %v1718, 0
    %v1734 = vsel %vm1726, %v1719, 0
    %v1737 = vsel %vm1726, %v1720, 0
    %v1740 = vsel %vm1726, %v1721, 0
    %v1743 = vsel %vm1726, %v1722, 0
    %v1746 = vsel %vm1726, %v1723, 0
    %v1749 = vsel %vm1726, %v1724, 0
    %vm1751 = vcmask 1042432
    %v1753 = vsel %vm1751, %v1725, 0
    %1755 = vmatprep.subr.bf16.mxu0 0
    %1756 = vmatpush1.bf16.msra.mxu0 %v1753
    %1757 = vmatprep.subr.bf16.mxu0 0
    %1758 = vmatpush1.bf16.msra.mxu0 0
    %1759 = vmatprep.subr.bf16.mxu0 0
    %1760 = vmatpush1.bf16.msra.mxu0 0
    %1761 = vmatprep.subr.bf16.mxu0 0
    %1762 = vmatpush1.bf16.msra.mxu0 0
    %1763 = vmatprep.subr.bf16.mxu0 0
    %1764 = vmatpush1.bf16.msra.mxu0 0
    %1765 = vmatprep.subr.bf16.mxu0 0
    %1766 = vmatpush1.bf16.msra.mxu0 0
    %1767 = vmatprep.subr.bf16.mxu0 0
    %1768 = vmatpush1.bf16.msra.mxu0 0
    %1769 = vmatprep.subr.bf16.mxu0 0
    %1770 = vmatpush1.bf16.msra.mxu0 0
    %1771 = vmatprep.subr.bf16.mxu0 0
    %1772 = vmatpush1.bf16.msra.mxu0 0
    %1773 = vmatprep.subr.bf16.mxu0 0
    %1774 = vmatpush1.bf16.msra.mxu0 0
    %1775 = vmatprep.subr.bf16.mxu0 0
    %1776 = vmatpush1.bf16.msra.mxu0 0
    %1777 = vmatprep.subr.bf16.mxu0 0
    %1778 = vmatpush1.bf16.msra.mxu0 0
    %1779 = vmatprep.subr.bf16.mxu0 0
    %1780 = vmatpush1.bf16.msra.mxu0 0
    %1781 = vmatprep.subr.bf16.mxu0 0
    %1782 = vmatpush1.bf16.msra.mxu0 0
    %1783 = vmatprep.subr.bf16.mxu0 0
    %1784 = vmatpush1.bf16.msra.mxu0 0
    %1785 = vmatprep.subr.bf16.mxu0 0
    %1786 = vmatpush1.bf16.msra.mxu0 0
    %1787 = vmatprep.mubr.bf16.mxu0 0
    %1788 = vmatmul.mubr.bf16.gmra.mrb[0].mxu0 %v1728
    %v1789 = vpop.f32.mrb[0].mxu0
    %v1790 = vadd.f32 0.0, %v1789
    %v1791 = vpop.f32.mrb[0].mxu0
    %v1792 = vpop.f32.mrb[0].mxu0
    %v1793 = vadd.f32 0.0, %v1792
    %v1794 = vpop.f32.mrb[0].mxu0
    %1795 = vmatprep.mubr.bf16.mxu0 0
    %1796 = vmatmul.mubr.bf16.gmra.mrb[0].mxu0 %v1731
    %v1797 = vpop.f32.mrb[0].mxu0
    %v1798 = vadd.f32 0.0, %v1797
    %v1799 = vpop.f32.mrb[0].mxu0
    %v1800 = vpop.f32.mrb[0].mxu0
    %v1801 = vadd.f32 0.0, %v1800
    %v1802 = vpop.f32.mrb[0].mxu0
    %1803 = vmatprep.mubr.bf16.mxu0 0
    %1804 = vmatmul.mubr.bf16.gmra.mrb[0].mxu0 %v1734
    %v1805 = vpop.f32.mrb[0].mxu0
    %v1806 = vadd.f32 0.0, %v1805
    %v1807 = vpop.f32.mrb[0].mxu0
    %v1808 = vpop.f32.mrb[0].mxu0
    %v1809 = vadd.f32 0.0, %v1808
    %v1810 = vpop.f32.mrb[0].mxu0
    %1811 = vmatprep.mubr.bf16.mxu0 0
    %1812 = vmatmul.mubr.bf16.gmra.mrb[0].mxu0 %v1737
    %v1813 = vpop.f32.mrb[0].mxu0
    %v1814 = vadd.f32 0.0, %v1813
    %v1815 = vpop.f32.mrb[0].mxu0
    %v1816 = vpop.f32.mrb[0].mxu0
    %v1817 = vadd.f32 0.0, %v1816
    %v1818 = vpop.f32.mrb[0].mxu0
    %1819 = vmatprep.mubr.bf16.mxu0 0
    %1820 = vmatmul.mubr.bf16.gmra.mrb[0].mxu0 %v1740
    %v1821 = vpop.f32.mrb[0].mxu0
    %v1822 = vadd.f32 0.0, %v1821
    %v1823 = vpop.f32.mrb[0].mxu0
    %v1824 = vpop.f32.mrb[0].mxu0
    %v1825 = vadd.f32 0.0, %v1824
    %v1826 = vpop.f32.mrb[0].mxu0
    %1827 = vmatprep.mubr.bf16.mxu0 0
    %1828 = vmatmul.mubr.bf16.gmra.mrb[0].mxu0 %v1743
    %v1829 = vpop.f32.mrb[0].mxu0
    %v1830 = vadd.f32 0.0, %v1829
    %v1831 = vpop.f32.mrb[0].mxu0
    %v1832 = vpop.f32.mrb[0].mxu0
    %v1833 = vadd.f32 0.0, %v1832
    %v1834 = vpop.f32.mrb[0].mxu0
    %1835 = vmatprep.mubr.bf16.mxu0 0
    %1836 = vmatmul.mubr.bf16.gmra.mrb[0].mxu0 %v1746
    %v1837 = vpop.f32.mrb[0].mxu0
    %v1838 = vadd.f32 0.0, %v1837
    %v1839 = vpop.f32.mrb[0].mxu0
    %v1840 = vpop.f32.mrb[0].mxu0
    %v1841 = vadd.f32 0.0, %v1840
    %v1842 = vpop.f32.mrb[0].mxu0
    %1843 = vmatprep.mubr.bf16.mxu0 0
    %1844 = vmatmul.mubr.bf16.gmra.mrb[0].mxu0 %v1749
    %v1845 = vpop.f32.mrb[0].mxu0
    %v1846 = vadd.f32 0.0, %v1845
    %v1847 = vpop.f32.mrb[0].mxu0
    %v1848 = vpop.f32.mrb[0].mxu0
    %v1849 = vadd.f32 0.0, %v1848
    %v1850 = vpop.f32.mrb[0].mxu0
    %1851 = vdwg.mxu0
    %v1852 = vxor.u32 %v1790, 2147483648
    %v1853 = vxor.u32 %v1793, 2147483648
    %v1854 = vxor.u32 %v1798, 2147483648
    %v1855 = vxor.u32 %v1801, 2147483648
    %v1856 = vxor.u32 %v1806, 2147483648
    %v1857 = vxor.u32 %v1809, 2147483648
    %v1858 = vxor.u32 %v1814, 2147483648
    %v1859 = vxor.u32 %v1817, 2147483648
    %v1860 = vxor.u32 %v1822, 2147483648
    %v1861 = vxor.u32 %v1825, 2147483648
    %v1862 = vxor.u32 %v1830, 2147483648
    %v1863 = vxor.u32 %v1833, 2147483648
    %v1864 = vxor.u32 %v1838, 2147483648
    %v1865 = vxor.u32 %v1841, 2147483648
    %v1866 = vxor.u32 %v1846, 2147483648
    %v1867 = vxor.u32 %v1849, 2147483648
    %v1868 = vmul.f32 %v1852, 1.442695
    %v1869 = vpow.pop %v1868
    %v1870 = vmul.f32 %v1853, 1.442695
    %v1871 = vpow.pop %v1870
    %v1872 = vmul.f32 %v1854, 1.442695
    %v1873 = vpow.pop %v1872
    %v1874 = vmul.f32 %v1855, 1.442695
    %v1875 = vpow.pop %v1874
    %v1876 = vmul.f32 %v1856, 1.442695
    %v1877 = vpow.pop %v1876
    %v1878 = vmul.f32 %v1857, 1.442695
    %v1879 = vpow.pop %v1878
    %v1880 = vmul.f32 %v1858, 1.442695
    %v1881 = vpow.pop %v1880
    %v1882 = vmul.f32 %v1859, 1.442695
    %v1883 = vpow.pop %v1882
    %v1884 = vmul.f32 %v1860, 1.442695
    %v1885 = vpow.pop %v1884
    %v1886 = vmul.f32 %v1861, 1.442695
    %v1887 = vpow.pop %v1886
    %v1888 = vmul.f32 %v1862, 1.442695
    %v1889 = vpow.pop %v1888
    %v1890 = vmul.f32 %v1863, 1.442695
    %v1891 = vpow.pop %v1890
    %v1892 = vmul.f32 %v1864, 1.442695
    %v1893 = vpow.pop %v1892
    %v1894 = vmul.f32 %v1865, 1.442695
    %v1895 = vpow.pop %v1894
    %v1896 = vmul.f32 %v1866, 1.442695
    %v1897 = vpow.pop %v1896
    %v1898 = vmul.f32 %v1867, 1.442695
    %v1899 = vpow.pop %v1898
    %v1900 = vadd.f32 %v1869, 1.0
    %v1901 = vadd.f32 %v1871, 1.0
    %v1902 = vadd.f32 %v1873, 1.0
    %v1903 = vadd.f32 %v1875, 1.0
    %v1904 = vadd.f32 %v1877, 1.0
    %v1905 = vadd.f32 %v1879, 1.0
    %v1906 = vadd.f32 %v1881, 1.0
    %v1907 = vadd.f32 %v1883, 1.0
    %v1908 = vadd.f32 %v1885, 1.0
    %v1909 = vadd.f32 %v1887, 1.0
    %v1910 = vadd.f32 %v1889, 1.0
    %v1911 = vadd.f32 %v1891, 1.0
    %v1912 = vadd.f32 %v1893, 1.0
    %v1913 = vadd.f32 %v1895, 1.0
    %v1914 = vadd.f32 %v1897, 1.0
    %v1915 = vadd.f32 %v1899, 1.0
    %v1916 = vrcp.pop %v1900
    %v1917 = vmul.f32 1.0, %v1916
    %v1918 = vrcp.pop %v1901
    %v1919 = vmul.f32 1.0, %v1918
    %v1920 = vrcp.pop %v1902
    %v1921 = vmul.f32 1.0, %v1920
    %v1922 = vrcp.pop %v1903
    %v1923 = vmul.f32 1.0, %v1922
    %v1924 = vrcp.pop %v1904
    %v1925 = vmul.f32 1.0, %v1924
    %v1926 = vrcp.pop %v1905
    %v1927 = vmul.f32 1.0, %v1926
    %v1928 = vrcp.pop %v1906
    %v1929 = vmul.f32 1.0, %v1928
    %v1930 = vrcp.pop %v1907
    %v1931 = vmul.f32 1.0, %v1930
    %v1932 = vrcp.pop %v1908
    %v1933 = vmul.f32 1.0, %v1932
    %v1934 = vrcp.pop %v1909
    %v1935 = vmul.f32 1.0, %v1934
    %v1936 = vrcp.pop %v1910
    %v1937 = vmul.f32 1.0, %v1936
    %v1938 = vrcp.pop %v1911
    %v1939 = vmul.f32 1.0, %v1938
    %v1940 = vrcp.pop %v1912
    %v1941 = vmul.f32 1.0, %v1940
    %v1942 = vrcp.pop %v1913
    %v1943 = vmul.f32 1.0, %v1942
    %v1944 = vrcp.pop %v1914
    %v1945 = vmul.f32 1.0, %v1944
    %v1946 = vrcp.pop %v1915
    %v1947 = vmul.f32 1.0, %v1946
    %1948 = vst [vmem:[#allocation2] sm:$0xff] %v1917
    %1949 = vst [vmem:[#allocation2 + $0x8] sm:$0xff] %v1919
    %1950 = vst [vmem:[#allocation2 + $0x10] sm:$0xff] %v1921
    %1951 = vst [vmem:[#allocation2 + $0x18] sm:$0xff] %v1923
    %1952 = vst [vmem:[#allocation2 + $0x20] sm:$0xff] %v1925
    %1953 = vst [vmem:[#allocation2 + $0x28] sm:$0xff] %v1927
    %1954 = vst [vmem:[#allocation2 + $0x30] sm:$0xff] %v1929
    %1955 = vst [vmem:[#allocation2 + $0x38] sm:$0xff] %v1931
    %1956 = vst [vmem:[#allocation2 + $0x40] sm:$0xff] %v1933
    %1957 = vst [vmem:[#allocation2 + $0x48] sm:$0xff] %v1935
    %1958 = vst [vmem:[#allocation2 + $0x50] sm:$0xff] %v1937
    %1959 = vst [vmem:[#allocation2 + $0x58] sm:$0xff] %v1939
    %1960 = vst [vmem:[#allocation2 + $0x60] sm:$0xff] %v1941
    %1961 = vst [vmem:[#allocation2 + $0x68] sm:$0xff] %v1943
    %1962 = vst [vmem:[#allocation2 + $0x70] sm:$0xff] %v1945
    %1963 = vst [vmem:[#allocation2 + $0x78] sm:$0xff] %v1947
    // Predicated region
    $region42: #{tpu_custom_call.1} parent=1 // pred_check
      _
    $region43: #{tpu_custom_call.1} parent=1 // pred_check_branch
      %1965 = sbr.rel (0) target = $region45
    $region44: #{tpu_custom_call.1} parent=1 // pred_region
      %s1967 = ssub.s32 2048, 2048
      %1968 = vsyncadd [#allocation3], %s1967
      %s1969 = sshll.u32 [#allocation2], 4
      %s1970 = int_to_ptr.vmem [resolvable:$true] %s1969
      %1975 = dma.vmem_to_hbm [thread:$0]  %s1970, 2048, %s10, [#allocation3], 128, 128, 8
    $region45: #{tpu_custom_call.1} parent=1 // pred_fallthru
      _
    // Predicated region
    $region46: #{tpu_custom_call.1} parent=1 // pred_check
      _
    $region47: #{tpu_custom_call.1} parent=1 // pred_check_branch
      %1977 = sbr.rel (0) target = $region49
    $region48: #{tpu_custom_call.1} parent=1 // pred_region
      %1978 = dma.done [#allocation3], 2048
    $region49: #{tpu_custom_call.1} parent=1 // pred_fallthru
      _
    %1979 = vsyncpa [#allocation3], 1

</llo_original>
